<compile_context>
chip_gen: v7x
topology: tpu7x:2x2x1
jax: 0.10.0
libtpu: 0.0.40
codegen_flags: <defaults>
</compile_context>

<pallas_src>
import functools

import jax
import jax.numpy as jnp
from jax.experimental import pallas as pl
from jax.experimental.pallas import tpu as pltpu


# ------------------------------ fused Pallas kernel ------------------------------

def _hgat_fused_kernel(x_ref, adj_ref, w0_ref, b0_ref, watt_ref, asrc_ref, adst_ref,
                       wp_ref, bp_ref, w1_ref, b1_ref, o_ref, *, num_heads):
    n = x_ref.shape[0]
    hid = w0_ref.shape[1]

    def proj_norm(y):
        # TODO(synk): exact HyperbolicLinear manifold projection is not in the provided
        # source; using a projective (unit-norm per row) normalization as the manifold map.
        inv_norm = jax.lax.rsqrt(jnp.sum(y * y, axis=-1, keepdims=True) + 1e-8)
        return y * inv_norm

    def cross_ratio(h, eps=1e-9):
        # cross ratio of rows 0..3, kept as a [1, 1] value (lane reduce w/ keepdims).
        def d(i, j):
            diff = h[i:i + 1, :] - h[j:j + 1, :]
            return jnp.sqrt(jnp.sum(diff * diff, axis=-1, keepdims=True) + eps)
        return (d(0, 2) * d(1, 3)) / (d(0, 3) * d(1, 2) + eps)

    # ---- layers[0]: HyperbolicLinear  in -> hidden ----
    h = jnp.dot(x_ref[...], w0_ref[...], preferred_element_type=jnp.float32) + b0_ref[...]
    h = proj_norm(h)

    has_cr = n > 3
    if has_cr:
        cr_init = cross_ratio(h)                                            # [1, 1]

    # ---- HyperbolicAttention (GAT-style, all heads in one 128-lane matmul) ----
    # TODO(synk): HyperbolicAttention internals are not in the provided source; using a
    # GAT-style masked-softmax attention per head as the attention mechanism.
    q_all = jnp.dot(h, watt_ref[...], preferred_element_type=jnp.float32)   # [N, H*hid]

    adj = adj_ref[...]                                                      # [N_dst, N_src]
    mask = adj > 0.0
    neg_bias = jnp.where(mask, 0.0, -1e30)                                  # computed once

    a_src = asrc_ref[...]                                                   # [H, hid]
    a_dst = adst_ref[...]                                                   # [H, hid]

    head_outs = []
    for hh in range(num_heads):
        q_h = q_all[:, hh * hid:(hh + 1) * hid]                             # [N, hid]
        # dst score: VPU mul + lane reduce (column layout needed anyway)
        s_dst = jnp.sum(q_h * a_dst[hh:hh + 1, :], axis=-1, keepdims=True)  # [N, 1]
        # src score: produce the [1, N] row directly (MXU handles the implicit transpose)
        s_src = jax.lax.dot_general(a_src[hh:hh + 1, :], q_h,
                                    (((1,), (1,)), ((), ())),
                                    preferred_element_type=jnp.float32)     # [1, N]
        e = s_dst + s_src                                                   # [N, N]
        e = jnp.where(e > 0, e, 0.2 * e)                                    # LeakyReLU(0.2)

        logits = e + neg_bias
        m = jnp.max(logits, axis=-1, keepdims=True)
        p = jnp.exp(logits - m)
        p = jnp.where(mask, p, 0.0)
        denom = jnp.sum(p, axis=-1, keepdims=True)
        # guard isolated destination nodes (zero incident edges) against 0-division
        alpha = p * pl.reciprocal(jnp.where(denom > 0, denom, 1.0), approx=False)

        head_outs.append(jnp.dot(alpha, q_h, preferred_element_type=jnp.float32))

    attn = jnp.concatenate(head_outs, axis=-1)                              # [N, H*hid]

    # ---- out_proj: hidden*heads -> out ----
    out = jnp.dot(attn, wp_ref[...], preferred_element_type=jnp.float32) + bp_ref[...]
    out = proj_norm(out)

    if has_cr:
        # TODO(synk): exact UHG restore_cross_ratio semantics not in the provided source;
        # rescale features so the current cross-ratio matches the initial one.
        cr_cur = cross_ratio(out)
        out = out * (cr_init / (cr_cur + 1e-9))                             # [1,1] bcast

    # ---- layers[1] + ReLU ----
    out = jnp.dot(out, w1_ref[...], preferred_element_type=jnp.float32) + b1_ref[...]
    out = proj_norm(out)
    out = jnp.maximum(out, 0.0)

    o_ref[...] = out.astype(o_ref.dtype)


def hgat_forward_fused(x, adj, params):
    """Single-pallas_call fused HGAT forward.  x: [N, in_c], adj: [N, N] -> [N, out_c]."""
    n = x.shape[0]
    out_c = params["W1"].shape[1]
    num_heads = params["a_src"].shape[0]

    # layers[1] consumes the out_proj output -> requires hidden == out (module constraint)
    assert params["Wp"].shape[1] == params["W1"].shape[0], \
        "HGAT requires hidden_channels == out_channels for layers[1] to type-check"

    kernel = functools.partial(_hgat_fused_kernel, num_heads=num_heads)
    vmem = pl.BlockSpec(memory_space=pltpu.MemorySpace.VMEM)

    return pl.pallas_call(
        kernel,
        out_shape=jax.ShapeDtypeStruct((n, out_c), jnp.float32),
        in_specs=[vmem] * 11,
        out_specs=vmem,
    )(x, adj,
      params["W0"], params["b0"],
      params["Watt"], params["a_src"], params["a_dst"],
      params["Wp"], params["bp"],
      params["W1"], params["b1"])


# ------------------------------ params & driver ------------------------------

def init_hgat_params(key, in_channels, hidden_channels, out_channels, num_heads):
    ks = jax.random.split(key, 6)

    def glorot(k, shape):
        fan_in, fan_out = shape[-2], shape[-1]
        lim = (6.0 / (fan_in + fan_out)) ** 0.5
        return jax.random.uniform(k, shape, jnp.float32, -lim, lim)

    return dict(
        W0=glorot(ks[0], (in_channels, hidden_channels)),                    # layers[0]
        b0=jnp.zeros((1, hidden_channels), jnp.float32),
        W1=glorot(ks[1], (hidden_channels, out_channels)),                   # layers[1]
        b1=jnp.zeros((1, out_channels), jnp.float32),
        # per-head projections stored pre-flattened as [hid, H*hid] so the kernel does a
        # single lane-dense matmul; column block h*hid:(h+1)*hid == head h's projection.
        Watt=glorot(ks[2], (hidden_channels, num_heads * hidden_channels)),
        a_src=0.1 * jax.random.normal(ks[3], (num_heads, hidden_channels), jnp.float32),
        a_dst=0.1 * jax.random.normal(ks[4], (num_heads, hidden_channels), jnp.float32),
        Wp=glorot(ks[5], (hidden_channels * num_heads, out_channels)),       # out_proj
        bp=jnp.zeros((1, out_channels), jnp.float32),
    )


@jax.jit
def hgat_forward(x, adj, params):
    return hgat_forward_fused(x, adj, params)


if __name__ == "__main__":
    N, IN_C, HID_C, OUT_C, HEADS = 16, 8, 32, 32, 4

    key = jax.random.PRNGKey(0)
    kx, kp = jax.random.split(key)
    x = jax.random.normal(kx, (N, IN_C), jnp.float32)

    # deterministic graph: bidirectional ring + self loops, COO edge_index [2, E]
    src = jnp.arange(N, dtype=jnp.int32)
    dst = (src + 1) % N
    edge_index = jnp.concatenate(
        [jnp.stack([src, dst]), jnp.stack([dst, src]), jnp.stack([src, src])], axis=1
    )
    # dense adjacency mask: adj[dst, src] = 1 for every edge src -> dst
    adj = jnp.zeros((N, N), jnp.float32).at[edge_index[1], edge_index[0]].set(1.0)

    params = init_hgat_params(kp, IN_C, HID_C, OUT_C, HEADS)

    out = hgat_forward(x, adj, params)
    jax.block_until_ready(out)

    assert out.shape == (N, OUT_C), out.shape
    assert bool(jnp.all(jnp.isfinite(out)))
    print("KERNEL_OK")
</pallas_src>

<mosaic_0001>
module attributes {stable_mosaic.version = 11 : i64} {
  func.func @_hgat_fused_kernel(%arg0: memref<16x8xf32, #tpu.memory_space<vmem>>, %arg1: memref<16x16xf32, #tpu.memory_space<vmem>>, %arg2: memref<8x32xf32, #tpu.memory_space<vmem>>, %arg3: memref<1x32xf32, #tpu.memory_space<vmem>>, %arg4: memref<32x128xf32, #tpu.memory_space<vmem>>, %arg5: memref<4x32xf32, #tpu.memory_space<vmem>>, %arg6: memref<4x32xf32, #tpu.memory_space<vmem>>, %arg7: memref<128x32xf32, #tpu.memory_space<vmem>>, %arg8: memref<1x32xf32, #tpu.memory_space<vmem>>, %arg9: memref<32x32xf32, #tpu.memory_space<vmem>>, %arg10: memref<1x32xf32, #tpu.memory_space<vmem>>, %arg11: memref<16x32xf32, #tpu.memory_space<vmem>>) attributes {dimension_semantics = [], scalar_prefetch = 0 : i64, scratch_operands = 0 : i64, tpu.core_type = #tpu.core_type<tc>} {
    %c0 = arith.constant 0 : index
    %c0_0 = arith.constant 0 : index
    %0 = vector.load %arg0[%c0, %c0_0] : memref<16x8xf32, #tpu.memory_space<vmem>>, vector<16x8xf32>
    %c0_1 = arith.constant 0 : index
    %c0_2 = arith.constant 0 : index
    %1 = vector.load %arg2[%c0_1, %c0_2] : memref<8x32xf32, #tpu.memory_space<vmem>>, vector<8x32xf32>
    %cst = arith.constant dense<0.000000e+00> : vector<16x32xf32>
    %2 = tpu.matmul %0, %1, %cst {dimension_numbers = #tpu.dot_dimension_numbers<[1], [0], [0], [1], [0, 0, 1, 1], [], []>} : vector<16x8xf32>, vector<8x32xf32>, vector<16x32xf32> -> vector<16x32xf32>
    %c0_3 = arith.constant 0 : index
    %c0_4 = arith.constant 0 : index
    %3 = vector.load %arg3[%c0_3, %c0_4] : memref<1x32xf32, #tpu.memory_space<vmem>>, vector<1x32xf32>
    %4 = vector.broadcast %3 : vector<1x32xf32> to vector<16x32xf32>
    %5 = arith.addf %2, %4 : vector<16x32xf32>
    %6 = arith.mulf %5, %5 : vector<16x32xf32>
    %cst_5 = arith.constant dense<0.000000e+00> : vector<16xf32>
    %7 = vector.multi_reduction <add>, %6, %cst_5 [1] : vector<16x32xf32> to vector<16xf32>
    %8 = vector.shape_cast %7 : vector<16xf32> to vector<16x1xf32>
    %cst_6 = arith.constant 9.99999993E-9 : f32
    %9 = vector.broadcast %cst_6 : f32 to vector<16x1xf32>
    %10 = arith.addf %8, %9 : vector<16x1xf32>
    %11 = math.rsqrt %10 : vector<16x1xf32>
    %12 = vector.broadcast %11 : vector<16x1xf32> to vector<16x32xf32>
    %13 = arith.mulf %5, %12 : vector<16x32xf32>
    %14 = vector.extract_strided_slice %13 {offsets = [0, 0], sizes = [1, 32], strides = [1, 1]} : vector<16x32xf32> to vector<1x32xf32>
    %15 = vector.extract_strided_slice %13 {offsets = [2, 0], sizes = [1, 32], strides = [1, 1]} : vector<16x32xf32> to vector<1x32xf32>
    %16 = arith.subf %14, %15 : vector<1x32xf32>
    %17 = arith.mulf %16, %16 : vector<1x32xf32>
    %cst_7 = arith.constant dense<0.000000e+00> : vector<1xf32>
    %18 = vector.multi_reduction <add>, %17, %cst_7 [1] : vector<1x32xf32> to vector<1xf32>
    %19 = vector.shape_cast %18 : vector<1xf32> to vector<1x1xf32>
    %cst_8 = arith.constant 9.99999971E-10 : f32
    %20 = vector.broadcast %cst_8 : f32 to vector<1x1xf32>
    %21 = arith.addf %19, %20 : vector<1x1xf32>
    %22 = math.sqrt %21 : vector<1x1xf32>
    %23 = vector.extract_strided_slice %13 {offsets = [1, 0], sizes = [1, 32], strides = [1, 1]} : vector<16x32xf32> to vector<1x32xf32>
    %24 = vector.extract_strided_slice %13 {offsets = [3, 0], sizes = [1, 32], strides = [1, 1]} : vector<16x32xf32> to vector<1x32xf32>
    %25 = arith.subf %23, %24 : vector<1x32xf32>
    %26 = arith.mulf %25, %25 : vector<1x32xf32>
    %cst_9 = arith.constant dense<0.000000e+00> : vector<1xf32>
    %27 = vector.multi_reduction <add>, %26, %cst_9 [1] : vector<1x32xf32> to vector<1xf32>
    %28 = vector.shape_cast %27 : vector<1xf32> to vector<1x1xf32>
    %cst_10 = arith.constant 9.99999971E-10 : f32
    %29 = vector.broadcast %cst_10 : f32 to vector<1x1xf32>
    %30 = arith.addf %28, %29 : vector<1x1xf32>
    %31 = math.sqrt %30 : vector<1x1xf32>
    %32 = arith.mulf %22, %31 : vector<1x1xf32>
    %33 = vector.extract_strided_slice %13 {offsets = [0, 0], sizes = [1, 32], strides = [1, 1]} : vector<16x32xf32> to vector<1x32xf32>
    %34 = vector.extract_strided_slice %13 {offsets = [3, 0], sizes = [1, 32], strides = [1, 1]} : vector<16x32xf32> to vector<1x32xf32>
    %35 = arith.subf %33, %34 : vector<1x32xf32>
    %36 = arith.mulf %35, %35 : vector<1x32xf32>
    %cst_11 = arith.constant dense<0.000000e+00> : vector<1xf32>
    %37 = vector.multi_reduction <add>, %36, %cst_11 [1] : vector<1x32xf32> to vector<1xf32>
    %38 = vector.shape_cast %37 : vector<1xf32> to vector<1x1xf32>
    %cst_12 = arith.constant 9.99999971E-10 : f32
    %39 = vector.broadcast %cst_12 : f32 to vector<1x1xf32>
    %40 = arith.addf %38, %39 : vector<1x1xf32>
    %41 = math.sqrt %40 : vector<1x1xf32>
    %42 = vector.extract_strided_slice %13 {offsets = [1, 0], sizes = [1, 32], strides = [1, 1]} : vector<16x32xf32> to vector<1x32xf32>
    %43 = vector.extract_strided_slice %13 {offsets = [2, 0], sizes = [1, 32], strides = [1, 1]} : vector<16x32xf32> to vector<1x32xf32>
    %44 = arith.subf %42, %43 : vector<1x32xf32>
    %45 = arith.mulf %44, %44 : vector<1x32xf32>
    %cst_13 = arith.constant dense<0.000000e+00> : vector<1xf32>
    %46 = vector.multi_reduction <add>, %45, %cst_13 [1] : vector<1x32xf32> to vector<1xf32>
    %47 = vector.shape_cast %46 : vector<1xf32> to vector<1x1xf32>
    %cst_14 = arith.constant 9.99999971E-10 : f32
    %48 = vector.broadcast %cst_14 : f32 to vector<1x1xf32>
    %49 = arith.addf %47, %48 : vector<1x1xf32>
    %50 = math.sqrt %49 : vector<1x1xf32>
    %51 = arith.mulf %41, %50 : vector<1x1xf32>
    %cst_15 = arith.constant 9.99999971E-10 : f32
    %52 = vector.broadcast %cst_15 : f32 to vector<1x1xf32>
    %53 = arith.addf %51, %52 : vector<1x1xf32>
    %54 = arith.divf %32, %53 : vector<1x1xf32>
    %c0_16 = arith.constant 0 : index
    %c0_17 = arith.constant 0 : index
    %55 = vector.load %arg4[%c0_16, %c0_17] : memref<32x128xf32, #tpu.memory_space<vmem>>, vector<32x128xf32>
    %cst_18 = arith.constant dense<0.000000e+00> : vector<16x128xf32>
    %56 = tpu.matmul %13, %55, %cst_18 {dimension_numbers = #tpu.dot_dimension_numbers<[1], [0], [0], [1], [0, 0, 1, 1], [], []>} : vector<16x32xf32>, vector<32x128xf32>, vector<16x128xf32> -> vector<16x128xf32>
    %c0_19 = arith.constant 0 : index
    %c0_20 = arith.constant 0 : index
    %57 = vector.load %arg1[%c0_19, %c0_20] : memref<16x16xf32, #tpu.memory_space<vmem>>, vector<16x16xf32>
    %cst_21 = arith.constant 0.000000e+00 : f32
    %58 = vector.broadcast %cst_21 : f32 to vector<16x16xf32>
    %59 = arith.cmpf ogt, %57, %58 : vector<16x16xf32>
    %cst_22 = arith.constant 0.000000e+00 : f32
    %cst_23 = arith.constant -1.000000e+30 : f32
    %60 = vector.broadcast %cst_22 : f32 to vector<16x16xf32>
    %61 = vector.broadcast %cst_23 : f32 to vector<16x16xf32>
    %62 = arith.select %59, %60, %61 : vector<16x16xi1>, vector<16x16xf32>
    %c0_24 = arith.constant 0 : index
    %c0_25 = arith.constant 0 : index
    %63 = vector.load %arg5[%c0_24, %c0_25] : memref<4x32xf32, #tpu.memory_space<vmem>>, vector<4x32xf32>
    %c0_26 = arith.constant 0 : index
    %c0_27 = arith.constant 0 : index
    %64 = vector.load %arg6[%c0_26, %c0_27] : memref<4x32xf32, #tpu.memory_space<vmem>>, vector<4x32xf32>
    %65 = vector.extract_strided_slice %56 {offsets = [0, 0], sizes = [16, 32], strides = [1, 1]} : vector<16x128xf32> to vector<16x32xf32>
    %66 = vector.extract_strided_slice %64 {offsets = [0, 0], sizes = [1, 32], strides = [1, 1]} : vector<4x32xf32> to vector<1x32xf32>
    %67 = vector.broadcast %66 : vector<1x32xf32> to vector<16x32xf32>
    %68 = arith.mulf %65, %67 : vector<16x32xf32>
    %cst_28 = arith.constant dense<0.000000e+00> : vector<16xf32>
    %69 = vector.multi_reduction <add>, %68, %cst_28 [1] : vector<16x32xf32> to vector<16xf32>
    %70 = vector.shape_cast %69 : vector<16xf32> to vector<16x1xf32>
    %71 = vector.extract_strided_slice %63 {offsets = [0, 0], sizes = [1, 32], strides = [1, 1]} : vector<4x32xf32> to vector<1x32xf32>
    %cst_29 = arith.constant dense<0.000000e+00> : vector<1x16xf32>
    %72 = tpu.matmul %71, %65, %cst_29 {dimension_numbers = #tpu.dot_dimension_numbers<[1], [1], [0], [0], [0, 0, 1, 0], [], []>} : vector<1x32xf32>, vector<16x32xf32>, vector<1x16xf32> -> vector<1x16xf32>
    %73 = vector.broadcast %70 : vector<16x1xf32> to vector<16x16xf32>
    %74 = vector.broadcast %72 : vector<1x16xf32> to vector<16x16xf32>
    %75 = arith.addf %73, %74 : vector<16x16xf32>
    %cst_30 = arith.constant 0.000000e+00 : f32
    %76 = vector.broadcast %cst_30 : f32 to vector<16x16xf32>
    %77 = arith.cmpf ogt, %75, %76 : vector<16x16xf32>
    %cst_31 = arith.constant 2.000000e-01 : f32
    %78 = vector.broadcast %cst_31 : f32 to vector<16x16xf32>
    %79 = arith.mulf %78, %75 : vector<16x16xf32>
    %80 = arith.select %77, %75, %79 : vector<16x16xi1>, vector<16x16xf32>
    %81 = arith.addf %80, %62 : vector<16x16xf32>
    %cst_32 = arith.constant dense<0xFF800000> : vector<16xf32>
    %82 = vector.multi_reduction <maximumf>, %81, %cst_32 [1] : vector<16x16xf32> to vector<16xf32>
    %83 = vector.shape_cast %82 : vector<16xf32> to vector<16x1xf32>
    %84 = vector.broadcast %83 : vector<16x1xf32> to vector<16x16xf32>
    %85 = arith.subf %81, %84 : vector<16x16xf32>
    %86 = math.exp %85 : vector<16x16xf32>
    %cst_33 = arith.constant 0.000000e+00 : f32
    %87 = vector.broadcast %cst_33 : f32 to vector<16x16xf32>
    %88 = arith.select %59, %86, %87 : vector<16x16xi1>, vector<16x16xf32>
    %cst_34 = arith.constant dense<0.000000e+00> : vector<16xf32>
    %89 = vector.multi_reduction <add>, %88, %cst_34 [1] : vector<16x16xf32> to vector<16xf32>
    %90 = vector.shape_cast %89 : vector<16xf32> to vector<16x1xf32>
    %cst_35 = arith.constant 0.000000e+00 : f32
    %91 = vector.broadcast %cst_35 : f32 to vector<16x1xf32>
    %92 = arith.cmpf ogt, %90, %91 : vector<16x1xf32>
    %cst_36 = arith.constant 1.000000e+00 : f32
    %93 = vector.broadcast %cst_36 : f32 to vector<16x1xf32>
    %94 = arith.select %92, %90, %93 : vector<16x1xi1>, vector<16x1xf32>
    %95 = tpu.reciprocal %94 : vector<16x1xf32> -> vector<16x1xf32>
    %96 = vector.broadcast %95 : vector<16x1xf32> to vector<16x16xf32>
    %97 = arith.mulf %88, %96 : vector<16x16xf32>
    %cst_37 = arith.constant dense<0.000000e+00> : vector<16x32xf32>
    %98 = tpu.matmul %97, %65, %cst_37 {dimension_numbers = #tpu.dot_dimension_numbers<[1], [0], [0], [1], [0, 0, 1, 1], [], []>} : vector<16x16xf32>, vector<16x32xf32>, vector<16x32xf32> -> vector<16x32xf32>
    %99 = vector.extract_strided_slice %56 {offsets = [0, 32], sizes = [16, 32], strides = [1, 1]} : vector<16x128xf32> to vector<16x32xf32>
    %100 = vector.extract_strided_slice %64 {offsets = [1, 0], sizes = [1, 32], strides = [1, 1]} : vector<4x32xf32> to vector<1x32xf32>
    %101 = vector.broadcast %100 : vector<1x32xf32> to vector<16x32xf32>
    %102 = arith.mulf %99, %101 : vector<16x32xf32>
    %cst_38 = arith.constant dense<0.000000e+00> : vector<16xf32>
    %103 = vector.multi_reduction <add>, %102, %cst_38 [1] : vector<16x32xf32> to vector<16xf32>
    %104 = vector.shape_cast %103 : vector<16xf32> to vector<16x1xf32>
    %105 = vector.extract_strided_slice %63 {offsets = [1, 0], sizes = [1, 32], strides = [1, 1]} : vector<4x32xf32> to vector<1x32xf32>
    %cst_39 = arith.constant dense<0.000000e+00> : vector<1x16xf32>
    %106 = tpu.matmul %105, %99, %cst_39 {dimension_numbers = #tpu.dot_dimension_numbers<[1], [1], [0], [0], [0, 0, 1, 0], [], []>} : vector<1x32xf32>, vector<16x32xf32>, vector<1x16xf32> -> vector<1x16xf32>
    %107 = vector.broadcast %104 : vector<16x1xf32> to vector<16x16xf32>
    %108 = vector.broadcast %106 : vector<1x16xf32> to vector<16x16xf32>
    %109 = arith.addf %107, %108 : vector<16x16xf32>
    %cst_40 = arith.constant 0.000000e+00 : f32
    %110 = vector.broadcast %cst_40 : f32 to vector<16x16xf32>
    %111 = arith.cmpf ogt, %109, %110 : vector<16x16xf32>
    %cst_41 = arith.constant 2.000000e-01 : f32
    %112 = vector.broadcast %cst_41 : f32 to vector<16x16xf32>
    %113 = arith.mulf %112, %109 : vector<16x16xf32>
    %114 = arith.select %111, %109, %113 : vector<16x16xi1>, vector<16x16xf32>
    %115 = arith.addf %114, %62 : vector<16x16xf32>
    %cst_42 = arith.constant dense<0xFF800000> : vector<16xf32>
    %116 = vector.multi_reduction <maximumf>, %115, %cst_42 [1] : vector<16x16xf32> to vector<16xf32>
    %117 = vector.shape_cast %116 : vector<16xf32> to vector<16x1xf32>
    %118 = vector.broadcast %117 : vector<16x1xf32> to vector<16x16xf32>
    %119 = arith.subf %115, %118 : vector<16x16xf32>
    %120 = math.exp %119 : vector<16x16xf32>
    %cst_43 = arith.constant 0.000000e+00 : f32
    %121 = vector.broadcast %cst_43 : f32 to vector<16x16xf32>
    %122 = arith.select %59, %120, %121 : vector<16x16xi1>, vector<16x16xf32>
    %cst_44 = arith.constant dense<0.000000e+00> : vector<16xf32>
    %123 = vector.multi_reduction <add>, %122, %cst_44 [1] : vector<16x16xf32> to vector<16xf32>
    %124 = vector.shape_cast %123 : vector<16xf32> to vector<16x1xf32>
    %cst_45 = arith.constant 0.000000e+00 : f32
    %125 = vector.broadcast %cst_45 : f32 to vector<16x1xf32>
    %126 = arith.cmpf ogt, %124, %125 : vector<16x1xf32>
    %cst_46 = arith.constant 1.000000e+00 : f32
    %127 = vector.broadcast %cst_46 : f32 to vector<16x1xf32>
    %128 = arith.select %126, %124, %127 : vector<16x1xi1>, vector<16x1xf32>
    %129 = tpu.reciprocal %128 : vector<16x1xf32> -> vector<16x1xf32>
    %130 = vector.broadcast %129 : vector<16x1xf32> to vector<16x16xf32>
    %131 = arith.mulf %122, %130 : vector<16x16xf32>
    %cst_47 = arith.constant dense<0.000000e+00> : vector<16x32xf32>
    %132 = tpu.matmul %131, %99, %cst_47 {dimension_numbers = #tpu.dot_dimension_numbers<[1], [0], [0], [1], [0, 0, 1, 1], [], []>} : vector<16x16xf32>, vector<16x32xf32>, vector<16x32xf32> -> vector<16x32xf32>
    %133 = vector.extract_strided_slice %56 {offsets = [0, 64], sizes = [16, 32], strides = [1, 1]} : vector<16x128xf32> to vector<16x32xf32>
    %134 = vector.extract_strided_slice %64 {offsets = [2, 0], sizes = [1, 32], strides = [1, 1]} : vector<4x32xf32> to vector<1x32xf32>
    %135 = vector.broadcast %134 : vector<1x32xf32> to vector<16x32xf32>
    %136 = arith.mulf %133, %135 : vector<16x32xf32>
    %cst_48 = arith.constant dense<0.000000e+00> : vector<16xf32>
    %137 = vector.multi_reduction <add>, %136, %cst_48 [1] : vector<16x32xf32> to vector<16xf32>
    %138 = vector.shape_cast %137 : vector<16xf32> to vector<16x1xf32>
    %139 = vector.extract_strided_slice %63 {offsets = [2, 0], sizes = [1, 32], strides = [1, 1]} : vector<4x32xf32> to vector<1x32xf32>
    %cst_49 = arith.constant dense<0.000000e+00> : vector<1x16xf32>
    %140 = tpu.matmul %139, %133, %cst_49 {dimension_numbers = #tpu.dot_dimension_numbers<[1], [1], [0], [0], [0, 0, 1, 0], [], []>} : vector<1x32xf32>, vector<16x32xf32>, vector<1x16xf32> -> vector<1x16xf32>
    %141 = vector.broadcast %138 : vector<16x1xf32> to vector<16x16xf32>
    %142 = vector.broadcast %140 : vector<1x16xf32> to vector<16x16xf32>
    %143 = arith.addf %141, %142 : vector<16x16xf32>
    %cst_50 = arith.constant 0.000000e+00 : f32
    %144 = vector.broadcast %cst_50 : f32 to vector<16x16xf32>
    %145 = arith.cmpf ogt, %143, %144 : vector<16x16xf32>
    %cst_51 = arith.constant 2.000000e-01 : f32
    %146 = vector.broadcast %cst_51 : f32 to vector<16x16xf32>
    %147 = arith.mulf %146, %143 : vector<16x16xf32>
    %148 = arith.select %145, %143, %147 : vector<16x16xi1>, vector<16x16xf32>
    %149 = arith.addf %148, %62 : vector<16x16xf32>
    %cst_52 = arith.constant dense<0xFF800000> : vector<16xf32>
    %150 = vector.multi_reduction <maximumf>, %149, %cst_52 [1] : vector<16x16xf32> to vector<16xf32>
    %151 = vector.shape_cast %150 : vector<16xf32> to vector<16x1xf32>
    %152 = vector.broadcast %151 : vector<16x1xf32> to vector<16x16xf32>
    %153 = arith.subf %149, %152 : vector<16x16xf32>
    %154 = math.exp %153 : vector<16x16xf32>
    %cst_53 = arith.constant 0.000000e+00 : f32
    %155 = vector.broadcast %cst_53 : f32 to vector<16x16xf32>
    %156 = arith.select %59, %154, %155 : vector<16x16xi1>, vector<16x16xf32>
    %cst_54 = arith.constant dense<0.000000e+00> : vector<16xf32>
    %157 = vector.multi_reduction <add>, %156, %cst_54 [1] : vector<16x16xf32> to vector<16xf32>
    %158 = vector.shape_cast %157 : vector<16xf32> to vector<16x1xf32>
    %cst_55 = arith.constant 0.000000e+00 : f32
    %159 = vector.broadcast %cst_55 : f32 to vector<16x1xf32>
    %160 = arith.cmpf ogt, %158, %159 : vector<16x1xf32>
    %cst_56 = arith.constant 1.000000e+00 : f32
    %161 = vector.broadcast %cst_56 : f32 to vector<16x1xf32>
    %162 = arith.select %160, %158, %161 : vector<16x1xi1>, vector<16x1xf32>
    %163 = tpu.reciprocal %162 : vector<16x1xf32> -> vector<16x1xf32>
    %164 = vector.broadcast %163 : vector<16x1xf32> to vector<16x16xf32>
    %165 = arith.mulf %156, %164 : vector<16x16xf32>
    %cst_57 = arith.constant dense<0.000000e+00> : vector<16x32xf32>
    %166 = tpu.matmul %165, %133, %cst_57 {dimension_numbers = #tpu.dot_dimension_numbers<[1], [0], [0], [1], [0, 0, 1, 1], [], []>} : vector<16x16xf32>, vector<16x32xf32>, vector<16x32xf32> -> vector<16x32xf32>
    %167 = vector.extract_strided_slice %56 {offsets = [0, 96], sizes = [16, 32], strides = [1, 1]} : vector<16x128xf32> to vector<16x32xf32>
    %168 = vector.extract_strided_slice %64 {offsets = [3, 0], sizes = [1, 32], strides = [1, 1]} : vector<4x32xf32> to vector<1x32xf32>
    %169 = vector.broadcast %168 : vector<1x32xf32> to vector<16x32xf32>
    %170 = arith.mulf %167, %169 : vector<16x32xf32>
    %cst_58 = arith.constant dense<0.000000e+00> : vector<16xf32>
    %171 = vector.multi_reduction <add>, %170, %cst_58 [1] : vector<16x32xf32> to vector<16xf32>
    %172 = vector.shape_cast %171 : vector<16xf32> to vector<16x1xf32>
    %173 = vector.extract_strided_slice %63 {offsets = [3, 0], sizes = [1, 32], strides = [1, 1]} : vector<4x32xf32> to vector<1x32xf32>
    %cst_59 = arith.constant dense<0.000000e+00> : vector<1x16xf32>
    %174 = tpu.matmul %173, %167, %cst_59 {dimension_numbers = #tpu.dot_dimension_numbers<[1], [1], [0], [0], [0, 0, 1, 0], [], []>} : vector<1x32xf32>, vector<16x32xf32>, vector<1x16xf32> -> vector<1x16xf32>
    %175 = vector.broadcast %172 : vector<16x1xf32> to vector<16x16xf32>
    %176 = vector.broadcast %174 : vector<1x16xf32> to vector<16x16xf32>
    %177 = arith.addf %175, %176 : vector<16x16xf32>
    %cst_60 = arith.constant 0.000000e+00 : f32
    %178 = vector.broadcast %cst_60 : f32 to vector<16x16xf32>
    %179 = arith.cmpf ogt, %177, %178 : vector<16x16xf32>
    %cst_61 = arith.constant 2.000000e-01 : f32
    %180 = vector.broadcast %cst_61 : f32 to vector<16x16xf32>
    %181 = arith.mulf %180, %177 : vector<16x16xf32>
    %182 = arith.select %179, %177, %181 : vector<16x16xi1>, vector<16x16xf32>
    %183 = arith.addf %182, %62 : vector<16x16xf32>
    %cst_62 = arith.constant dense<0xFF800000> : vector<16xf32>
    %184 = vector.multi_reduction <maximumf>, %183, %cst_62 [1] : vector<16x16xf32> to vector<16xf32>
    %185 = vector.shape_cast %184 : vector<16xf32> to vector<16x1xf32>
    %186 = vector.broadcast %185 : vector<16x1xf32> to vector<16x16xf32>
    %187 = arith.subf %183, %186 : vector<16x16xf32>
    %188 = math.exp %187 : vector<16x16xf32>
    %cst_63 = arith.constant 0.000000e+00 : f32
    %189 = vector.broadcast %cst_63 : f32 to vector<16x16xf32>
    %190 = arith.select %59, %188, %189 : vector<16x16xi1>, vector<16x16xf32>
    %cst_64 = arith.constant dense<0.000000e+00> : vector<16xf32>
    %191 = vector.multi_reduction <add>, %190, %cst_64 [1] : vector<16x16xf32> to vector<16xf32>
    %192 = vector.shape_cast %191 : vector<16xf32> to vector<16x1xf32>
    %cst_65 = arith.constant 0.000000e+00 : f32
    %193 = vector.broadcast %cst_65 : f32 to vector<16x1xf32>
    %194 = arith.cmpf ogt, %192, %193 : vector<16x1xf32>
    %cst_66 = arith.constant 1.000000e+00 : f32
    %195 = vector.broadcast %cst_66 : f32 to vector<16x1xf32>
    %196 = arith.select %194, %192, %195 : vector<16x1xi1>, vector<16x1xf32>
    %197 = tpu.reciprocal %196 : vector<16x1xf32> -> vector<16x1xf32>
    %198 = vector.broadcast %197 : vector<16x1xf32> to vector<16x16xf32>
    %199 = arith.mulf %190, %198 : vector<16x16xf32>
    %cst_67 = arith.constant dense<0.000000e+00> : vector<16x32xf32>
    %200 = tpu.matmul %199, %167, %cst_67 {dimension_numbers = #tpu.dot_dimension_numbers<[1], [0], [0], [1], [0, 0, 1, 1], [], []>} : vector<16x16xf32>, vector<16x32xf32>, vector<16x32xf32> -> vector<16x32xf32>
    %201 = tpu.concatenate %98, %132, %166, %200 in 1 : vector<16x32xf32>, vector<16x32xf32>, vector<16x32xf32>, vector<16x32xf32> -> vector<16x128xf32>
    %c0_68 = arith.constant 0 : index
    %c0_69 = arith.constant 0 : index
    %202 = vector.load %arg7[%c0_68, %c0_69] : memref<128x32xf32, #tpu.memory_space<vmem>>, vector<128x32xf32>
    %cst_70 = arith.constant dense<0.000000e+00> : vector<16x32xf32>
    %203 = tpu.matmul %201, %202, %cst_70 {dimension_numbers = #tpu.dot_dimension_numbers<[1], [0], [0], [1], [0, 0, 1, 1], [], []>} : vector<16x128xf32>, vector<128x32xf32>, vector<16x32xf32> -> vector<16x32xf32>
    %c0_71 = arith.constant 0 : index
    %c0_72 = arith.constant 0 : index
    %204 = vector.load %arg8[%c0_71, %c0_72] : memref<1x32xf32, #tpu.memory_space<vmem>>, vector<1x32xf32>
    %205 = vector.broadcast %204 : vector<1x32xf32> to vector<16x32xf32>
    %206 = arith.addf %203, %205 : vector<16x32xf32>
    %207 = arith.mulf %206, %206 : vector<16x32xf32>
    %cst_73 = arith.constant dense<0.000000e+00> : vector<16xf32>
    %208 = vector.multi_reduction <add>, %207, %cst_73 [1] : vector<16x32xf32> to vector<16xf32>
    %209 = vector.shape_cast %208 : vector<16xf32> to vector<16x1xf32>
    %cst_74 = arith.constant 9.99999993E-9 : f32
    %210 = vector.broadcast %cst_74 : f32 to vector<16x1xf32>
    %211 = arith.addf %209, %210 : vector<16x1xf32>
    %212 = math.rsqrt %211 : vector<16x1xf32>
    %213 = vector.broadcast %212 : vector<16x1xf32> to vector<16x32xf32>
    %214 = arith.mulf %206, %213 : vector<16x32xf32>
    %215 = vector.extract_strided_slice %214 {offsets = [0, 0], sizes = [1, 32], strides = [1, 1]} : vector<16x32xf32> to vector<1x32xf32>
    %216 = vector.extract_strided_slice %214 {offsets = [2, 0], sizes = [1, 32], strides = [1, 1]} : vector<16x32xf32> to vector<1x32xf32>
    %217 = arith.subf %215, %216 : vector<1x32xf32>
    %218 = arith.mulf %217, %217 : vector<1x32xf32>
    %cst_75 = arith.constant dense<0.000000e+00> : vector<1xf32>
    %219 = vector.multi_reduction <add>, %218, %cst_75 [1] : vector<1x32xf32> to vector<1xf32>
    %220 = vector.shape_cast %219 : vector<1xf32> to vector<1x1xf32>
    %cst_76 = arith.constant 9.99999971E-10 : f32
    %221 = vector.broadcast %cst_76 : f32 to vector<1x1xf32>
    %222 = arith.addf %220, %221 : vector<1x1xf32>
    %223 = math.sqrt %222 : vector<1x1xf32>
    %224 = vector.extract_strided_slice %214 {offsets = [1, 0], sizes = [1, 32], strides = [1, 1]} : vector<16x32xf32> to vector<1x32xf32>
    %225 = vector.extract_strided_slice %214 {offsets = [3, 0], sizes = [1, 32], strides = [1, 1]} : vector<16x32xf32> to vector<1x32xf32>
    %226 = arith.subf %224, %225 : vector<1x32xf32>
    %227 = arith.mulf %226, %226 : vector<1x32xf32>
    %cst_77 = arith.constant dense<0.000000e+00> : vector<1xf32>
    %228 = vector.multi_reduction <add>, %227, %cst_77 [1] : vector<1x32xf32> to vector<1xf32>
    %229 = vector.shape_cast %228 : vector<1xf32> to vector<1x1xf32>
    %cst_78 = arith.constant 9.99999971E-10 : f32
    %230 = vector.broadcast %cst_78 : f32 to vector<1x1xf32>
    %231 = arith.addf %229, %230 : vector<1x1xf32>
    %232 = math.sqrt %231 : vector<1x1xf32>
    %233 = arith.mulf %223, %232 : vector<1x1xf32>
    %234 = vector.extract_strided_slice %214 {offsets = [0, 0], sizes = [1, 32], strides = [1, 1]} : vector<16x32xf32> to vector<1x32xf32>
    %235 = vector.extract_strided_slice %214 {offsets = [3, 0], sizes = [1, 32], strides = [1, 1]} : vector<16x32xf32> to vector<1x32xf32>
    %236 = arith.subf %234, %235 : vector<1x32xf32>
    %237 = arith.mulf %236, %236 : vector<1x32xf32>
    %cst_79 = arith.constant dense<0.000000e+00> : vector<1xf32>
    %238 = vector.multi_reduction <add>, %237, %cst_79 [1] : vector<1x32xf32> to vector<1xf32>
    %239 = vector.shape_cast %238 : vector<1xf32> to vector<1x1xf32>
    %cst_80 = arith.constant 9.99999971E-10 : f32
    %240 = vector.broadcast %cst_80 : f32 to vector<1x1xf32>
    %241 = arith.addf %239, %240 : vector<1x1xf32>
    %242 = math.sqrt %241 : vector<1x1xf32>
    %243 = vector.extract_strided_slice %214 {offsets = [1, 0], sizes = [1, 32], strides = [1, 1]} : vector<16x32xf32> to vector<1x32xf32>
    %244 = vector.extract_strided_slice %214 {offsets = [2, 0], sizes = [1, 32], strides = [1, 1]} : vector<16x32xf32> to vector<1x32xf32>
    %245 = arith.subf %243, %244 : vector<1x32xf32>
    %246 = arith.mulf %245, %245 : vector<1x32xf32>
    %cst_81 = arith.constant dense<0.000000e+00> : vector<1xf32>
    %247 = vector.multi_reduction <add>, %246, %cst_81 [1] : vector<1x32xf32> to vector<1xf32>
    %248 = vector.shape_cast %247 : vector<1xf32> to vector<1x1xf32>
    %cst_82 = arith.constant 9.99999971E-10 : f32
    %249 = vector.broadcast %cst_82 : f32 to vector<1x1xf32>
    %250 = arith.addf %248, %249 : vector<1x1xf32>
    %251 = math.sqrt %250 : vector<1x1xf32>
    %252 = arith.mulf %242, %251 : vector<1x1xf32>
    %cst_83 = arith.constant 9.99999971E-10 : f32
    %253 = vector.broadcast %cst_83 : f32 to vector<1x1xf32>
    %254 = arith.addf %252, %253 : vector<1x1xf32>
    %255 = arith.divf %233, %254 : vector<1x1xf32>
    %cst_84 = arith.constant 9.99999971E-10 : f32
    %256 = vector.broadcast %cst_84 : f32 to vector<1x1xf32>
    %257 = arith.addf %255, %256 : vector<1x1xf32>
    %258 = arith.divf %54, %257 : vector<1x1xf32>
    %259 = vector.broadcast %258 : vector<1x1xf32> to vector<16x32xf32>
    %260 = arith.mulf %214, %259 : vector<16x32xf32>
    %c0_85 = arith.constant 0 : index
    %c0_86 = arith.constant 0 : index
    %261 = vector.load %arg9[%c0_85, %c0_86] : memref<32x32xf32, #tpu.memory_space<vmem>>, vector<32x32xf32>
    %cst_87 = arith.constant dense<0.000000e+00> : vector<16x32xf32>
    %262 = tpu.matmul %260, %261, %cst_87 {dimension_numbers = #tpu.dot_dimension_numbers<[1], [0], [0], [1], [0, 0, 1, 1], [], []>} : vector<16x32xf32>, vector<32x32xf32>, vector<16x32xf32> -> vector<16x32xf32>
    %c0_88 = arith.constant 0 : index
    %c0_89 = arith.constant 0 : index
    %263 = vector.load %arg10[%c0_88, %c0_89] : memref<1x32xf32, #tpu.memory_space<vmem>>, vector<1x32xf32>
    %264 = vector.broadcast %263 : vector<1x32xf32> to vector<16x32xf32>
    %265 = arith.addf %262, %264 : vector<16x32xf32>
    %266 = arith.mulf %265, %265 : vector<16x32xf32>
    %cst_90 = arith.constant dense<0.000000e+00> : vector<16xf32>
    %267 = vector.multi_reduction <add>, %266, %cst_90 [1] : vector<16x32xf32> to vector<16xf32>
    %268 = vector.shape_cast %267 : vector<16xf32> to vector<16x1xf32>
    %cst_91 = arith.constant 9.99999993E-9 : f32
    %269 = vector.broadcast %cst_91 : f32 to vector<16x1xf32>
    %270 = arith.addf %268, %269 : vector<16x1xf32>
    %271 = math.rsqrt %270 : vector<16x1xf32>
    %272 = vector.broadcast %271 : vector<16x1xf32> to vector<16x32xf32>
    %273 = arith.mulf %265, %272 : vector<16x32xf32>
    %cst_92 = arith.constant 0.000000e+00 : f32
    %274 = vector.broadcast %cst_92 : f32 to vector<16x32xf32>
    %275 = arith.maximumf %273, %274 : vector<16x32xf32>
    %c0_93 = arith.constant 0 : index
    %c0_94 = arith.constant 0 : index
    %276 = vector.load %arg11[%c0_93, %c0_94] : memref<16x32xf32, #tpu.memory_space<vmem>>, vector<16x32xf32>
    tpu.vector_store %arg11[%c0_93, %c0_94], %275 {strides = array<i32>} : memref<16x32xf32, #tpu.memory_space<vmem>>, vector<16x32xf32>,
    return
  }
}

</mosaic_0001>

<llo_original>
// kernel: hgat_forward.1
$region0: #{hgat_forward.1}
  #allocation0 [shape = 'u32[]', space=smem, size = 0x4, offset = 0x4, fixed_abs, tag = 'smem constant byte address 0x4 - core index']
  #allocation1 [shape = 'u32[144,128]{1,0:T(1,128)}', space=vmem, size = 0x12000, scoped, tag = 'internal scratch']
  %s0 = inlined_call_operand.vmem [shape: f32[16,8], index: 0, kind: input, shape index: {}]
  %s1 = inlined_call_operand.vmem [shape: f32[16,16], index: 1, kind: input, shape index: {}]
  %s2 = inlined_call_operand.vmem [shape: f32[8,32], index: 2, kind: input, shape index: {}]
  %s3 = inlined_call_operand.vmem [shape: f32[1,32], index: 3, kind: input, shape index: {}]
  %s4 = inlined_call_operand.vmem [shape: f32[32,128], index: 4, kind: input, shape index: {}]
  %s5 = inlined_call_operand.vmem [shape: f32[4,32], index: 5, kind: input, shape index: {}]
  %s6 = inlined_call_operand.vmem [shape: f32[4,32], index: 6, kind: input, shape index: {}]
  %s7 = inlined_call_operand.vmem [shape: f32[128,32], index: 7, kind: input, shape index: {}]
  %s8 = inlined_call_operand.vmem [shape: f32[1,32], index: 8, kind: input, shape index: {}]
  %s9 = inlined_call_operand.vmem [shape: f32[32,32], index: 9, kind: input, shape index: {}]
  %s10 = inlined_call_operand.vmem [shape: f32[1,32], index: 10, kind: input, shape index: {}]
  %s11 = inlined_call_operand.hbm [shape: f32[16,32], index: 11, kind: output, shape index: {}]
  %s12 = sld [smem:[#allocation0]]
  $region54: #{hgat_forward.1} parent=0
    _
  %s14 = ssub.s32 1, %s12
  %s15 = scalar_select 0, %s14, %s12
  $region1: #{hgat_forward.1} parent=0
    #allocation2 [shape = 'u8[8192]{0}', space=vmem, size = 0x2000, scoped, tag = 'output window, operand 0, single buffered']
    #allocation3 [shape = 's32[1]{0}', space=sflag, size = 0x4, scoped, tag = 'scoped memory for hgat_forward.1']
    %16 = vsyncpa [#allocation3], 0
    // Predicated region
    $region2: #{hgat_forward.1} parent=1 // pred_check
      _
    $region3: #{hgat_forward.1} parent=1 // pred_check_branch
      %18 = sbr.rel (0) target = $region5
    $region4: #{hgat_forward.1} parent=1 // pred_region
      _
    $region5: #{hgat_forward.1} parent=1 // pred_fallthru
      _
    // Predicated region
    $region6: #{hgat_forward.1} parent=1 // pred_check
      _
    $region7: #{hgat_forward.1} parent=1 // pred_check_branch
      %20 = sbr.rel (0) target = $region9
    $region8: #{hgat_forward.1} parent=1 // pred_region
      _
    $region9: #{hgat_forward.1} parent=1 // pred_fallthru
      _
    // Predicated region
    $region10: #{hgat_forward.1} parent=1 // pred_check
      _
    $region11: #{hgat_forward.1} parent=1 // pred_check_branch
      %22 = sbr.rel (0) target = $region13
    $region12: #{hgat_forward.1} parent=1 // pred_region
      _
    $region13: #{hgat_forward.1} parent=1 // pred_fallthru
      _
    // Predicated region
    $region14: #{hgat_forward.1} parent=1 // pred_check
      _
    $region15: #{hgat_forward.1} parent=1 // pred_check_branch
      %24 = sbr.rel (0) target = $region17
    $region16: #{hgat_forward.1} parent=1 // pred_region
      _
    $region17: #{hgat_forward.1} parent=1 // pred_fallthru
      _
    // Predicated region
    $region18: #{hgat_forward.1} parent=1 // pred_check
      _
    $region19: #{hgat_forward.1} parent=1 // pred_check_branch
      %26 = sbr.rel (0) target = $region21
    $region20: #{hgat_forward.1} parent=1 // pred_region
      _
    $region21: #{hgat_forward.1} parent=1 // pred_fallthru
      _
    // Predicated region
    $region22: #{hgat_forward.1} parent=1 // pred_check
      _
    $region23: #{hgat_forward.1} parent=1 // pred_check_branch
      %28 = sbr.rel (0) target = $region25
    $region24: #{hgat_forward.1} parent=1 // pred_region
      _
    $region25: #{hgat_forward.1} parent=1 // pred_fallthru
      _
    // Predicated region
    $region26: #{hgat_forward.1} parent=1 // pred_check
      _
    $region27: #{hgat_forward.1} parent=1 // pred_check_branch
      %30 = sbr.rel (0) target = $region29
    $region28: #{hgat_forward.1} parent=1 // pred_region
      _
    $region29: #{hgat_forward.1} parent=1 // pred_fallthru
      _
    // Predicated region
    $region30: #{hgat_forward.1} parent=1 // pred_check
      _
    $region31: #{hgat_forward.1} parent=1 // pred_check_branch
      %32 = sbr.rel (0) target = $region33
    $region32: #{hgat_forward.1} parent=1 // pred_region
      _
    $region33: #{hgat_forward.1} parent=1 // pred_fallthru
      _
    // Predicated region
    $region34: #{hgat_forward.1} parent=1 // pred_check
      _
    $region35: #{hgat_forward.1} parent=1 // pred_check_branch
      %34 = sbr.rel (0) target = $region37
    $region36: #{hgat_forward.1} parent=1 // pred_region
      _
    $region37: #{hgat_forward.1} parent=1 // pred_fallthru
      _
    // Predicated region
    $region38: #{hgat_forward.1} parent=1 // pred_check
      _
    $region39: #{hgat_forward.1} parent=1 // pred_check_branch
      %36 = sbr.rel (0) target = $region41
    $region40: #{hgat_forward.1} parent=1 // pred_region
      _
    $region41: #{hgat_forward.1} parent=1 // pred_fallthru
      _
    // Predicated region
    $region42: #{hgat_forward.1} parent=1 // pred_check
      _
    $region43: #{hgat_forward.1} parent=1 // pred_check_branch
      %38 = sbr.rel (0) target = $region45
    $region44: #{hgat_forward.1} parent=1 // pred_region
      _
    $region45: #{hgat_forward.1} parent=1 // pred_fallthru
      _
    %v39 = vld [vmem:[%s0] sm:$0xff]
    %v40 = vld [vmem:[%s0 + $0x8] sm:$0xff]
    %v41 = vld [vmem:[%s2] sm:$0xff]
    %v42 = vld [vmem:[%s3] sm:$0x1]
    %v44 = vlaneseq
    %v45 = vshrl.u32 %v44, 7
    %v46 = vsub.s32 0, %v45
    %v47 = vrot.slane %v42, %v46
    %vm49 = vcmask 64512
    %v51 = vsel %vm49, %v39, 0
    %v54 = vsel %vm49, %v40, 0
    %56 = vmatprep.subr.mxu0 0.0
    %57 = vmatpush1.msra.mxu0 %v41
    %58 = vmatprep.subr.mxu0 0.0
    %59 = vmatpush1.msra.mxu0 0.0
    %60 = vmatprep.subr.mxu0 0.0
    %61 = vmatpush1.msra.mxu0 0.0
    %62 = vmatprep.subr.mxu0 0.0
    %63 = vmatpush1.msra.mxu0 0.0
    %64 = vmatprep.subr.mxu0 0.0
    %65 = vmatpush1.msra.mxu0 0.0
    %66 = vmatprep.subr.mxu0 0.0
    %67 = vmatpush1.msra.mxu0 0.0
    %68 = vmatprep.subr.mxu0 0.0
    %69 = vmatpush1.msra.mxu0 0.0
    %70 = vmatprep.subr.mxu0 0.0
    %71 = vmatpush1.msra.mxu0 0.0
    %72 = vmatprep.subr.mxu0 0.0
    %73 = vmatpush1.msra.mxu0 0.0
    %74 = vmatprep.subr.mxu0 0.0
    %75 = vmatpush1.msra.mxu0 0.0
    %76 = vmatprep.subr.mxu0 0.0
    %77 = vmatpush1.msra.mxu0 0.0
    %78 = vmatprep.subr.mxu0 0.0
    %79 = vmatpush1.msra.mxu0 0.0
    %80 = vmatprep.subr.mxu0 0.0
    %81 = vmatpush1.msra.mxu0 0.0
    %82 = vmatprep.subr.mxu0 0.0
    %83 = vmatpush1.msra.mxu0 0.0
    %84 = vmatprep.subr.mxu0 0.0
    %85 = vmatpush1.msra.mxu0 0.0
    %86 = vmatprep.subr.mxu0 0.0
    %87 = vmatpush1.msra.mxu0 0.0
    %88 = vmatprep.subr.mxu0 0.0
    %89 = vmatpush1.msra.mxu0 0.0
    %90 = vmatprep.subr.mxu0 0.0
    %91 = vmatpush1.msra.mxu0 0.0
    %92 = vmatprep.subr.mxu0 0.0
    %93 = vmatpush1.msra.mxu0 0.0
    %94 = vmatprep.subr.mxu0 0.0
    %95 = vmatpush1.msra.mxu0 0.0
    %96 = vmatprep.subr.mxu0 0.0
    %97 = vmatpush1.msra.mxu0 0.0
    %98 = vmatprep.subr.mxu0 0.0
    %99 = vmatpush1.msra.mxu0 0.0
    %100 = vmatprep.subr.mxu0 0.0
    %101 = vmatpush1.msra.mxu0 0.0
    %102 = vmatprep.subr.mxu0 0.0
    %103 = vmatpush1.msra.mxu0 0.0
    %104 = vmatprep.subr.mxu0 0.0
    %105 = vmatpush1.msra.mxu0 0.0
    %106 = vmatprep.subr.mxu0 0.0
    %107 = vmatpush1.msra.mxu0 0.0
    %108 = vmatprep.subr.mxu0 0.0
    %109 = vmatpush1.msra.mxu0 0.0
    %110 = vmatprep.subr.mxu0 0.0
    %111 = vmatpush1.msra.mxu0 0.0
    %112 = vmatprep.subr.mxu0 0.0
    %113 = vmatpush1.msra.mxu0 0.0
    %114 = vmatprep.subr.mxu0 0.0
    %115 = vmatpush1.msra.mxu0 0.0
    %116 = vmatprep.subr.mxu0 0.0
    %117 = vmatpush1.msra.mxu0 0.0
    %118 = vmatprep.subr.mxu0 0.0
    %119 = vmatpush1.msra.mxu0 0.0
    %120 = vmatprep.mubr.f32.mxu0 0.0
    %121 = vmatmul.mubr.f32.gmra.mrb[0].mxu0 %v51
    %v122 = vpop.f32.mrb[0].mxu0
    %v123 = vadd.f32 %v47, %v122
    %v124 = vpop.f32.mrb[0].mxu0
    %125 = vmatprep.mubr.f32.mxu0 0.0
    %126 = vmatmul.mubr.f32.gmra.mrb[0].mxu0 %v54
    %v127 = vpop.f32.mrb[0].mxu0
    %v128 = vadd.f32 %v47, %v127
    %v129 = vpop.f32.mrb[0].mxu0
    %130 = vdwg.mxu0
    %v131 = vmul.f32 %v123, %v123
    %v132 = vmul.f32 %v128, %v128
    %vm133 = vcmask 261120
    %v134 = vsel %vm133, %v131, 0.0
    %135 = vadd.xlane.f32.xlu0 %v134
    %v136 = vpop.xlane.xlu0 %135
    %v137 = vsel %vm133, %v132, 0.0
    %138 = vadd.xlane.f32.xlu0 %v137
    %v139 = vpop.xlane.xlu0 %138
    %v140 = vadd.f32 %v136, 1e-08
    %v141 = vadd.f32 %v139, 1e-08
    %v142 = vrsqrt.pop %v140
    %v143 = vrsqrt.pop %v141
    %v144 = vmul.f32 %v123, %v142
    %v145 = vmul.f32 %v128, %v143
    %v147 = vrot.slane %v144, 2
    %v149 = vsub.f32 %v144, %v147
    %v150 = vmul.f32 %v149, %v149
    %vm151 = vcmask 253952
    %v152 = vsel %vm151, %v150, 0.0
    %153 = vadd.xlane.f32.xlu0 %v152
    %v154 = vpop.xlane.xlu0 %153
    %v155 = vadd.f32 %v154, 1e-09
    %v156 = vrsqrt.pop %v155
    %v157 = vmul.f32 %v155, %v156
    %vm158 = vcmp.eq.f32.partialorder %v155, inf
    %v159 = vsel %vm158, %v155, %v157
    %vm160 = vcmp.eq.f32.partialorder %v155, 0.0
    %v161 = vand.u32 %v155, 2147483648
    %v162 = vsel %vm160, %v161, %v159
    %vm163 = vcmask 254977
    %v164 = vsel %vm163, %v150, 0.0
    %165 = vadd.xlane.f32.xlu0 %v164
    %v166 = vpop.xlane.xlu0 %165
    %v167 = vadd.f32 %v166, 1e-09
    %v168 = vrsqrt.pop %v167
    %v169 = vmul.f32 %v167, %v168
    %vm170 = vcmp.eq.f32.partialorder %v167, inf
    %v171 = vsel %vm170, %v167, %v169
    %vm172 = vcmp.eq.f32.partialorder %v167, 0.0
    %v173 = vand.u32 %v167, 2147483648
    %v174 = vsel %vm172, %v173, %v171
    %v176 = vrot.slane %v174, 1
    %v178 = vmul.f32 %v162, %v176
    %v179 = vrot.slane %v144, 3
    %v181 = vsub.f32 %v144, %v179
    %v182 = vmul.f32 %v181, %v181
    %v183 = vsel %vm151, %v182, 0.0
    %184 = vadd.xlane.f32.xlu0 %v183
    %v185 = vpop.xlane.xlu0 %184
    %v186 = vadd.f32 %v185, 1e-09
    %v187 = vrsqrt.pop %v186
    %v188 = vmul.f32 %v186, %v187
    %vm189 = vcmp.eq.f32.partialorder %v186, inf
    %v190 = vsel %vm189, %v186, %v188
    %vm191 = vcmp.eq.f32.partialorder %v186, 0.0
    %v192 = vand.u32 %v186, 2147483648
    %v193 = vsel %vm191, %v192, %v190
    %v194 = vrot.slane %v144, 1
    %v196 = vsub.f32 %v144, %v194
    %v197 = vmul.f32 %v196, %v196
    %v198 = vsel %vm163, %v197, 0.0
    %199 = vadd.xlane.f32.xlu0 %v198
    %v200 = vpop.xlane.xlu0 %199
    %v201 = vadd.f32 %v200, 1e-09
    %v202 = vrsqrt.pop %v201
    %v203 = vmul.f32 %v201, %v202
    %vm204 = vcmp.eq.f32.partialorder %v201, inf
    %v205 = vsel %vm204, %v201, %v203
    %vm206 = vcmp.eq.f32.partialorder %v201, 0.0
    %v207 = vand.u32 %v201, 2147483648
    %v208 = vsel %vm206, %v207, %v205
    %v210 = vrot.slane %v208, 1
    %v212 = vmul.f32 %v193, %v210
    %v213 = vadd.f32 %v212, 1e-09
    %v214 = vrcp.pop %v213
    %v215 = vmul.f32 %v178, %v214
    %v216 = vld [vmem:[%s4] sm:$0xff]
    %v217 = vld [vmem:[%s4 + $0x8] sm:$0xff]
    %v218 = vld [vmem:[%s4 + $0x10] sm:$0xff]
    %v219 = vld [vmem:[%s4 + $0x18] sm:$0xff]
    %v220 = vsel %vm133, %v144, 0
    %v223 = vsel %vm133, %v145, 0
    %225 = vmatprep.subr.mxu0 0.0
    %226 = vmatpush1.msra.mxu0 %v216
    %227 = vmatprep.subr.mxu0 0.0
    %228 = vmatpush1.msra.mxu0 %v217
    %229 = vmatprep.subr.mxu0 0.0
    %230 = vmatpush1.msra.mxu0 %v218
    %231 = vmatprep.subr.mxu0 0.0
    %232 = vmatpush1.msra.mxu0 %v219
    %233 = vmatprep.subr.mxu0 0.0
    %234 = vmatpush1.msra.mxu0 0.0
    %235 = vmatprep.subr.mxu0 0.0
    %236 = vmatpush1.msra.mxu0 0.0
    %237 = vmatprep.subr.mxu0 0.0
    %238 = vmatpush1.msra.mxu0 0.0
    %239 = vmatprep.subr.mxu0 0.0
    %240 = vmatpush1.msra.mxu0 0.0
    %241 = vmatprep.subr.mxu0 0.0
    %242 = vmatpush1.msra.mxu0 0.0
    %243 = vmatprep.subr.mxu0 0.0
    %244 = vmatpush1.msra.mxu0 0.0
    %245 = vmatprep.subr.mxu0 0.0
    %246 = vmatpush1.msra.mxu0 0.0
    %247 = vmatprep.subr.mxu0 0.0
    %248 = vmatpush1.msra.mxu0 0.0
    %249 = vmatprep.subr.mxu0 0.0
    %250 = vmatpush1.msra.mxu0 0.0
    %251 = vmatprep.subr.mxu0 0.0
    %252 = vmatpush1.msra.mxu0 0.0
    %253 = vmatprep.subr.mxu0 0.0
    %254 = vmatpush1.msra.mxu0 0.0
    %255 = vmatprep.subr.mxu0 0.0
    %256 = vmatpush1.msra.mxu0 0.0
    %257 = vmatprep.subr.mxu0 0.0
    %258 = vmatpush1.msra.mxu0 0.0
    %259 = vmatprep.subr.mxu0 0.0
    %260 = vmatpush1.msra.mxu0 0.0
    %261 = vmatprep.subr.mxu0 0.0
    %262 = vmatpush1.msra.mxu0 0.0
    %263 = vmatprep.subr.mxu0 0.0
    %264 = vmatpush1.msra.mxu0 0.0
    %265 = vmatprep.subr.mxu0 0.0
    %266 = vmatpush1.msra.mxu0 0.0
    %267 = vmatprep.subr.mxu0 0.0
    %268 = vmatpush1.msra.mxu0 0.0
    %269 = vmatprep.subr.mxu0 0.0
    %270 = vmatpush1.msra.mxu0 0.0
    %271 = vmatprep.subr.mxu0 0.0
    %272 = vmatpush1.msra.mxu0 0.0
    %273 = vmatprep.subr.mxu0 0.0
    %274 = vmatpush1.msra.mxu0 0.0
    %275 = vmatprep.subr.mxu0 0.0
    %276 = vmatpush1.msra.mxu0 0.0
    %277 = vmatprep.subr.mxu0 0.0
    %278 = vmatpush1.msra.mxu0 0.0
    %279 = vmatprep.subr.mxu0 0.0
    %280 = vmatpush1.msra.mxu0 0.0
    %281 = vmatprep.subr.mxu0 0.0
    %282 = vmatpush1.msra.mxu0 0.0
    %283 = vmatprep.subr.mxu0 0.0
    %284 = vmatpush1.msra.mxu0 0.0
    %285 = vmatprep.subr.mxu0 0.0
    %286 = vmatpush1.msra.mxu0 0.0
    %287 = vmatprep.subr.mxu0 0.0
    %288 = vmatpush1.msra.mxu0 0.0
    %289 = vmatprep.mubr.f32.mxu0 0.0
    %290 = vmatmul.mubr.f32.gmra.mrb[0].mxu0 %v220
    %v291 = vpop.f32.mrb[0].mxu0
    %v292 = vadd.f32 0.0, %v291
    %v293 = vpop.f32.mrb[0].mxu0
    %294 = vmatprep.mubr.f32.mxu0 0.0
    %295 = vmatmul.mubr.f32.gmra.mrb[0].mxu0 %v223
    %v296 = vpop.f32.mrb[0].mxu0
    %v297 = vadd.f32 0.0, %v296
    %v298 = vpop.f32.mrb[0].mxu0
    %299 = vdwg.mxu0
    %v300 = vld [vmem:[%s1] sm:$0xff]
    %v301 = vld [vmem:[%s1 + $0x8] sm:$0xff]
    %vm302 = vcmp.gt.f32.partialorder %v300, 0.0
    %vm303 = vcmp.gt.f32.partialorder %v301, 0.0
    %v304 = vsel %vm302, 0.0, -1e+30
    %v305 = vsel %vm303, 0.0, -1e+30
    %v306 = vld [vmem:[%s5] sm:$0xf]
    %v307 = vld [vmem:[%s6] sm:$0xf]
    %v308 = vlaneseq
    %v309 = vshrl.u32 %v308, 7
    %v310 = vsub.s32 0, %v309
    %v311 = vrot.slane %v307, %v310
    %v312 = vmul.f32 %v292, %v311
    %v313 = vmul.f32 %v297, %v311
    %v314 = vsel %vm133, %v312, 0.0
    %315 = vadd.xlane.f32.xlu0 %v314
    %v316 = vpop.xlane.xlu0 %315
    %v317 = vsel %vm133, %v313, 0.0
    %318 = vadd.xlane.f32.xlu0 %v317
    %v319 = vpop.xlane.xlu0 %318
    %v321 = vsel %vm133, %v306, 0
    %v324 = vsel %vm133, %v292, 0
    %v327 = vsel %vm133, %v297, 0
    %329 = vmatprep.subr.mxu0 0.0
    %330 = vmatpush1.xpose.msra.mxu0 %v324
    %331 = vmatprep.subr.mxu0 0.0
    %332 = vmatpush1.xpose.msra.mxu0 %v327
    %333 = vmatprep.subr.mxu0 0.0
    %334 = vmatpush1.xpose.msra.mxu0 0.0
    %335 = vmatprep.subr.mxu0 0.0
    %336 = vmatpush1.xpose.msra.mxu0 0.0
    %337 = vmatprep.subr.mxu0 0.0
    %338 = vmatpush1.xpose.msra.mxu0 0.0
    %339 = vmatprep.subr.mxu0 0.0
    %340 = vmatpush1.xpose.msra.mxu0 0.0
    %341 = vmatprep.subr.mxu0 0.0
    %342 = vmatpush1.xpose.msra.mxu0 0.0
    %343 = vmatprep.subr.mxu0 0.0
    %344 = vmatpush1.xpose.msra.mxu0 0.0
    %345 = vmatprep.subr.mxu0 0.0
    %346 = vmatpush1.xpose.msra.mxu0 0.0
    %347 = vmatprep.subr.mxu0 0.0
    %348 = vmatpush1.xpose.msra.mxu0 0.0
    %349 = vmatprep.subr.mxu0 0.0
    %350 = vmatpush1.xpose.msra.mxu0 0.0
    %351 = vmatprep.subr.mxu0 0.0
    %352 = vmatpush1.xpose.msra.mxu0 0.0
    %353 = vmatprep.subr.mxu0 0.0
    %354 = vmatpush1.xpose.msra.mxu0 0.0
    %355 = vmatprep.subr.mxu0 0.0
    %356 = vmatpush1.xpose.msra.mxu0 0.0
    %357 = vmatprep.subr.mxu0 0.0
    %358 = vmatpush1.xpose.msra.mxu0 0.0
    %359 = vmatprep.subr.mxu0 0.0
    %360 = vmatpush1.xpose.msra.mxu0 0.0
    %361 = vmatprep.subr.mxu0 0.0
    %362 = vmatpush1.xpose.msra.mxu0 0.0
    %363 = vmatprep.subr.mxu0 0.0
    %364 = vmatpush1.xpose.msra.mxu0 0.0
    %365 = vmatprep.subr.mxu0 0.0
    %366 = vmatpush1.xpose.msra.mxu0 0.0
    %367 = vmatprep.subr.mxu0 0.0
    %368 = vmatpush1.xpose.msra.mxu0 0.0
    %369 = vmatprep.subr.mxu0 0.0
    %370 = vmatpush1.xpose.msra.mxu0 0.0
    %371 = vmatprep.subr.mxu0 0.0
    %372 = vmatpush1.xpose.msra.mxu0 0.0
    %373 = vmatprep.subr.mxu0 0.0
    %374 = vmatpush1.xpose.msra.mxu0 0.0
    %375 = vmatprep.subr.mxu0 0.0
    %376 = vmatpush1.xpose.msra.mxu0 0.0
    %377 = vmatprep.subr.mxu0 0.0
    %378 = vmatpush1.xpose.msra.mxu0 0.0
    %379 = vmatprep.subr.mxu0 0.0
    %380 = vmatpush1.xpose.msra.mxu0 0.0
    %381 = vmatprep.subr.mxu0 0.0
    %382 = vmatpush1.xpose.msra.mxu0 0.0
    %383 = vmatprep.subr.mxu0 0.0
    %384 = vmatpush1.xpose.msra.mxu0 0.0
    %385 = vmatprep.subr.mxu0 0.0
    %386 = vmatpush1.xpose.msra.mxu0 0.0
    %387 = vmatprep.subr.mxu0 0.0
    %388 = vmatpush1.xpose.msra.mxu0 0.0
    %389 = vmatprep.subr.mxu0 0.0
    %390 = vmatpush1.xpose.msra.mxu0 0.0
    %391 = vmatprep.subr.mxu0 0.0
    %392 = vmatpush1.xpose.msra.mxu0 0.0
    %393 = vmatprep.mubr.f32.mxu0 0.0
    %394 = vmatmul.mubr.f32.gmra.mrb[0].mxu0 %v321
    %v395 = vpop.f32.mrb[0].mxu0
    %v396 = vadd.f32 0.0, %v395
    %v397 = vpop.f32.mrb[0].mxu0
    %398 = vdwg.mxu0
    %v399 = vlaneseq
    %v400 = vshrl.u32 %v399, 7
    %v401 = vsub.s32 0, %v400
    %v402 = vrot.slane %v396, %v401
    %v403 = vadd.f32 %v316, %v402
    %v404 = vadd.f32 %v319, %v402
    %vm405 = vcmp.gt.f32.partialorder %v403, 0.0
    %vm406 = vcmp.gt.f32.partialorder %v404, 0.0
    %v407 = vmul.f32 %v403, 0.2
    %v408 = vmul.f32 %v404, 0.2
    %v409 = vsel %vm405, %v403, %v407
    %v410 = vsel %vm406, %v404, %v408
    %v411 = vadd.f32 %v409, %v304
    %v412 = vadd.f32 %v410, %v305
    %vm413 = vcmask 130048
    %v414 = vsel %vm413, %v411, -inf
    %415 = vmax.xlane.f32.xlu0 %v414
    %v416 = vpop.xlane.xlu0 %415
    %v417 = vsel %vm413, %v412, -inf
    %418 = vmax.xlane.f32.xlu0 %v417
    %v419 = vpop.xlane.xlu0 %418
    %v420 = vsub.f32 %v411, %v416
    %v421 = vsub.f32 %v412, %v419
    %v422 = vmul.f32 %v420, 1.442695
    %v423 = vpow.pop %v422
    %v424 = vmul.f32 %v421, 1.442695
    %v425 = vpow.pop %v424
    %v426 = vsel %vm302, %v423, 0.0
    %v427 = vsel %vm303, %v425, 0.0
    %v428 = vsel %vm413, %v426, 0.0
    %429 = vadd.xlane.f32.xlu0 %v428
    %v430 = vpop.xlane.xlu0 %429
    %v431 = vsel %vm413, %v427, 0.0
    %432 = vadd.xlane.f32.xlu0 %v431
    %v433 = vpop.xlane.xlu0 %432
    %vm434 = vcmp.gt.f32.partialorder %v430, 0.0
    %vm435 = vcmp.gt.f32.partialorder %v433, 0.0
    %v436 = vsel %vm434, %v430, 1.0
    %v437 = vsel %vm435, %v433, 1.0
    %v438 = vrcp.pop %v436
    %v439 = vrcp.pop %v437
    %v440 = vmul.f32 %v426, %v438
    %v441 = vmul.f32 %v427, %v439
    %v443 = vsel %vm413, %v440, 0
    %v446 = vsel %vm413, %v441, 0
    %448 = vmatprep.subr.mxu0 0.0
    %449 = vmatpush1.msra.mxu0 %v292
    %450 = vmatprep.subr.mxu0 0.0
    %451 = vmatpush1.msra.mxu0 %v297
    %452 = vmatprep.subr.mxu0 0.0
    %453 = vmatpush1.msra.mxu0 0.0
    %454 = vmatprep.subr.mxu0 0.0
    %455 = vmatpush1.msra.mxu0 0.0
    %456 = vmatprep.subr.mxu0 0.0
    %457 = vmatpush1.msra.mxu0 0.0
    %458 = vmatprep.subr.mxu0 0.0
    %459 = vmatpush1.msra.mxu0 0.0
    %460 = vmatprep.subr.mxu0 0.0
    %461 = vmatpush1.msra.mxu0 0.0
    %462 = vmatprep.subr.mxu0 0.0
    %463 = vmatpush1.msra.mxu0 0.0
    %464 = vmatprep.subr.mxu0 0.0
    %465 = vmatpush1.msra.mxu0 0.0
    %466 = vmatprep.subr.mxu0 0.0
    %467 = vmatpush1.msra.mxu0 0.0
    %468 = vmatprep.subr.mxu0 0.0
    %469 = vmatpush1.msra.mxu0 0.0
    %470 = vmatprep.subr.mxu0 0.0
    %471 = vmatpush1.msra.mxu0 0.0
    %472 = vmatprep.subr.mxu0 0.0
    %473 = vmatpush1.msra.mxu0 0.0
    %474 = vmatprep.subr.mxu0 0.0
    %475 = vmatpush1.msra.mxu0 0.0
    %476 = vmatprep.subr.mxu0 0.0
    %477 = vmatpush1.msra.mxu0 0.0
    %478 = vmatprep.subr.mxu0 0.0
    %479 = vmatpush1.msra.mxu0 0.0
    %480 = vmatprep.subr.mxu0 0.0
    %481 = vmatpush1.msra.mxu0 0.0
    %482 = vmatprep.subr.mxu0 0.0
    %483 = vmatpush1.msra.mxu0 0.0
    %484 = vmatprep.subr.mxu0 0.0
    %485 = vmatpush1.msra.mxu0 0.0
    %486 = vmatprep.subr.mxu0 0.0
    %487 = vmatpush1.msra.mxu0 0.0
    %488 = vmatprep.subr.mxu0 0.0
    %489 = vmatpush1.msra.mxu0 0.0
    %490 = vmatprep.subr.mxu0 0.0
    %491 = vmatpush1.msra.mxu0 0.0
    %492 = vmatprep.subr.mxu0 0.0
    %493 = vmatpush1.msra.mxu0 0.0
    %494 = vmatprep.subr.mxu0 0.0
    %495 = vmatpush1.msra.mxu0 0.0
    %496 = vmatprep.subr.mxu0 0.0
    %497 = vmatpush1.msra.mxu0 0.0
    %498 = vmatprep.subr.mxu0 0.0
    %499 = vmatpush1.msra.mxu0 0.0
    %500 = vmatprep.subr.mxu0 0.0
    %501 = vmatpush1.msra.mxu0 0.0
    %502 = vmatprep.subr.mxu0 0.0
    %503 = vmatpush1.msra.mxu0 0.0
    %504 = vmatprep.subr.mxu0 0.0
    %505 = vmatpush1.msra.mxu0 0.0
    %506 = vmatprep.subr.mxu0 0.0
    %507 = vmatpush1.msra.mxu0 0.0
    %508 = vmatprep.subr.mxu0 0.0
    %509 = vmatpush1.msra.mxu0 0.0
    %510 = vmatprep.subr.mxu0 0.0
    %511 = vmatpush1.msra.mxu0 0.0
    %512 = vmatprep.mubr.f32.mxu0 0.0
    %513 = vmatmul.mubr.f32.gmra.mrb[0].mxu0 %v443
    %v514 = vpop.f32.mrb[0].mxu0
    %v515 = vadd.f32 0.0, %v514
    %v516 = vpop.f32.mrb[0].mxu0
    %517 = vmatprep.mubr.f32.mxu0 0.0
    %518 = vmatmul.mubr.f32.gmra.mrb[0].mxu0 %v446
    %v519 = vpop.f32.mrb[0].mxu0
    %v520 = vadd.f32 0.0, %v519
    %v521 = vpop.f32.mrb[0].mxu0
    %522 = vdwg.mxu0
    %v523 = vlaneseq
    %v524 = vshrl.u32 %v523, 7
    %v525 = vsub.s32 1, %v524
    %v526 = vrot.slane %v307, %v525
    %528 = vrot.lane.b32.xlu0 %v526, 32
    %v529 = vpop.permute.xlu0 %528
    %v531 = vmul.f32 %v292, %v529
    %v532 = vmul.f32 %v297, %v529
    %535 = vrot.lane.b32.xlu0 %v531, 96
    %v536 = vpop.permute.xlu0 %535
    %537 = vrot.lane.b32.xlu0 %v532, 96
    %v538 = vpop.permute.xlu0 %537
    %v541 = vsel %vm133, %v536, 0.0
    %542 = vadd.xlane.f32.xlu0 %v541
    %v543 = vpop.xlane.xlu0 %542
    %v544 = vsel %vm133, %v538, 0.0
    %545 = vadd.xlane.f32.xlu0 %v544
    %v546 = vpop.xlane.xlu0 %545
    %v547 = vrot.slane %v306, 1
    %548 = vrot.lane.b32.xlu0 %v292, 96
    %v549 = vpop.permute.xlu0 %548
    %550 = vrot.lane.b32.xlu0 %v297, 96
    %v551 = vpop.permute.xlu0 %550
    %v552 = vsel %vm133, %v547, 0
    %v554 = vsel %vm133, %v549, 0
    %v556 = vsel %vm133, %v551, 0
    %558 = vmatprep.subr.mxu0 0.0
    %559 = vmatpush1.xpose.msra.mxu0 %v554
    %560 = vmatprep.subr.mxu0 0.0
    %561 = vmatpush1.xpose.msra.mxu0 %v556
    %562 = vmatprep.subr.mxu0 0.0
    %563 = vmatpush1.xpose.msra.mxu0 0.0
    %564 = vmatprep.subr.mxu0 0.0
    %565 = vmatpush1.xpose.msra.mxu0 0.0
    %566 = vmatprep.subr.mxu0 0.0
    %567 = vmatpush1.xpose.msra.mxu0 0.0
    %568 = vmatprep.subr.mxu0 0.0
    %569 = vmatpush1.xpose.msra.mxu0 0.0
    %570 = vmatprep.subr.mxu0 0.0
    %571 = vmatpush1.xpose.msra.mxu0 0.0
    %572 = vmatprep.subr.mxu0 0.0
    %573 = vmatpush1.xpose.msra.mxu0 0.0
    %574 = vmatprep.subr.mxu0 0.0
    %575 = vmatpush1.xpose.msra.mxu0 0.0
    %576 = vmatprep.subr.mxu0 0.0
    %577 = vmatpush1.xpose.msra.mxu0 0.0
    %578 = vmatprep.subr.mxu0 0.0
    %579 = vmatpush1.xpose.msra.mxu0 0.0
    %580 = vmatprep.subr.mxu0 0.0
    %581 = vmatpush1.xpose.msra.mxu0 0.0
    %582 = vmatprep.subr.mxu0 0.0
    %583 = vmatpush1.xpose.msra.mxu0 0.0
    %584 = vmatprep.subr.mxu0 0.0
    %585 = vmatpush1.xpose.msra.mxu0 0.0
    %586 = vmatprep.subr.mxu0 0.0
    %587 = vmatpush1.xpose.msra.mxu0 0.0
    %588 = vmatprep.subr.mxu0 0.0
    %589 = vmatpush1.xpose.msra.mxu0 0.0
    %590 = vmatprep.subr.mxu0 0.0
    %591 = vmatpush1.xpose.msra.mxu0 0.0
    %592 = vmatprep.subr.mxu0 0.0
    %593 = vmatpush1.xpose.msra.mxu0 0.0
    %594 = vmatprep.subr.mxu0 0.0
    %595 = vmatpush1.xpose.msra.mxu0 0.0
    %596 = vmatprep.subr.mxu0 0.0
    %597 = vmatpush1.xpose.msra.mxu0 0.0
    %598 = vmatprep.subr.mxu0 0.0
    %599 = vmatpush1.xpose.msra.mxu0 0.0
    %600 = vmatprep.subr.mxu0 0.0
    %601 = vmatpush1.xpose.msra.mxu0 0.0
    %602 = vmatprep.subr.mxu0 0.0
    %603 = vmatpush1.xpose.msra.mxu0 0.0
    %604 = vmatprep.subr.mxu0 0.0
    %605 = vmatpush1.xpose.msra.mxu0 0.0
    %606 = vmatprep.subr.mxu0 0.0
    %607 = vmatpush1.xpose.msra.mxu0 0.0
    %608 = vmatprep.subr.mxu0 0.0
    %609 = vmatpush1.xpose.msra.mxu0 0.0
    %610 = vmatprep.subr.mxu0 0.0
    %611 = vmatpush1.xpose.msra.mxu0 0.0
    %612 = vmatprep.subr.mxu0 0.0
    %613 = vmatpush1.xpose.msra.mxu0 0.0
    %614 = vmatprep.subr.mxu0 0.0
    %615 = vmatpush1.xpose.msra.mxu0 0.0
    %616 = vmatprep.subr.mxu0 0.0
    %617 = vmatpush1.xpose.msra.mxu0 0.0
    %618 = vmatprep.subr.mxu0 0.0
    %619 = vmatpush1.xpose.msra.mxu0 0.0
    %620 = vmatprep.subr.mxu0 0.0
    %621 = vmatpush1.xpose.msra.mxu0 0.0
    %622 = vmatprep.mubr.f32.mxu0 0.0
    %623 = vmatmul.mubr.f32.gmra.mrb[0].mxu0 %v552
    %v624 = vpop.f32.mrb[0].mxu0
    %v625 = vadd.f32 0.0, %v624
    %v626 = vpop.f32.mrb[0].mxu0
    %627 = vdwg.mxu0
    %v628 = vlaneseq
    %v629 = vshrl.u32 %v628, 7
    %v630 = vsub.s32 0, %v629
    %v631 = vrot.slane %v625, %v630
    %v632 = vadd.f32 %v543, %v631
    %v633 = vadd.f32 %v546, %v631
    %vm634 = vcmp.gt.f32.partialorder %v632, 0.0
    %vm635 = vcmp.gt.f32.partialorder %v633, 0.0
    %v636 = vmul.f32 %v632, 0.2
    %v637 = vmul.f32 %v633, 0.2
    %v638 = vsel %vm634, %v632, %v636
    %v639 = vsel %vm635, %v633, %v637
    %v640 = vadd.f32 %v638, %v304
    %v641 = vadd.f32 %v639, %v305
    %v642 = vsel %vm413, %v640, -inf
    %643 = vmax.xlane.f32.xlu0 %v642
    %v644 = vpop.xlane.xlu0 %643
    %v645 = vsel %vm413, %v641, -inf
    %646 = vmax.xlane.f32.xlu0 %v645
    %v647 = vpop.xlane.xlu0 %646
    %v648 = vsub.f32 %v640, %v644
    %v649 = vsub.f32 %v641, %v647
    %v650 = vmul.f32 %v648, 1.442695
    %v651 = vpow.pop %v650
    %v652 = vmul.f32 %v649, 1.442695
    %v653 = vpow.pop %v652
    %v654 = vsel %vm302, %v651, 0.0
    %v655 = vsel %vm303, %v653, 0.0
    %v656 = vsel %vm413, %v654, 0.0
    %657 = vadd.xlane.f32.xlu0 %v656
    %v658 = vpop.xlane.xlu0 %657
    %v659 = vsel %vm413, %v655, 0.0
    %660 = vadd.xlane.f32.xlu0 %v659
    %v661 = vpop.xlane.xlu0 %660
    %vm662 = vcmp.gt.f32.partialorder %v658, 0.0
    %vm663 = vcmp.gt.f32.partialorder %v661, 0.0
    %v664 = vsel %vm662, %v658, 1.0
    %v665 = vsel %vm663, %v661, 1.0
    %v666 = vrcp.pop %v664
    %v667 = vrcp.pop %v665
    %v668 = vmul.f32 %v654, %v666
    %v669 = vmul.f32 %v655, %v667
    %v673 = vsel %vm413, %v668, 0
    %v676 = vsel %vm413, %v669, 0
    %678 = vmatprep.subr.mxu0 0.0
    %679 = vmatpush1.msra.mxu0 %v549
    %680 = vmatprep.subr.mxu0 0.0
    %681 = vmatpush1.msra.mxu0 %v551
    %682 = vmatprep.subr.mxu0 0.0
    %683 = vmatpush1.msra.mxu0 0.0
    %684 = vmatprep.subr.mxu0 0.0
    %685 = vmatpush1.msra.mxu0 0.0
    %686 = vmatprep.subr.mxu0 0.0
    %687 = vmatpush1.msra.mxu0 0.0
    %688 = vmatprep.subr.mxu0 0.0
    %689 = vmatpush1.msra.mxu0 0.0
    %690 = vmatprep.subr.mxu0 0.0
    %691 = vmatpush1.msra.mxu0 0.0
    %692 = vmatprep.subr.mxu0 0.0
    %693 = vmatpush1.msra.mxu0 0.0
    %694 = vmatprep.subr.mxu0 0.0
    %695 = vmatpush1.msra.mxu0 0.0
    %696 = vmatprep.subr.mxu0 0.0
    %697 = vmatpush1.msra.mxu0 0.0
    %698 = vmatprep.subr.mxu0 0.0
    %699 = vmatpush1.msra.mxu0 0.0
    %700 = vmatprep.subr.mxu0 0.0
    %701 = vmatpush1.msra.mxu0 0.0
    %702 = vmatprep.subr.mxu0 0.0
    %703 = vmatpush1.msra.mxu0 0.0
    %704 = vmatprep.subr.mxu0 0.0
    %705 = vmatpush1.msra.mxu0 0.0
    %706 = vmatprep.subr.mxu0 0.0
    %707 = vmatpush1.msra.mxu0 0.0
    %708 = vmatprep.subr.mxu0 0.0
    %709 = vmatpush1.msra.mxu0 0.0
    %710 = vmatprep.subr.mxu0 0.0
    %711 = vmatpush1.msra.mxu0 0.0
    %712 = vmatprep.subr.mxu0 0.0
    %713 = vmatpush1.msra.mxu0 0.0
    %714 = vmatprep.subr.mxu0 0.0
    %715 = vmatpush1.msra.mxu0 0.0
    %716 = vmatprep.subr.mxu0 0.0
    %717 = vmatpush1.msra.mxu0 0.0
    %718 = vmatprep.subr.mxu0 0.0
    %719 = vmatpush1.msra.mxu0 0.0
    %720 = vmatprep.subr.mxu0 0.0
    %721 = vmatpush1.msra.mxu0 0.0
    %722 = vmatprep.subr.mxu0 0.0
    %723 = vmatpush1.msra.mxu0 0.0
    %724 = vmatprep.subr.mxu0 0.0
    %725 = vmatpush1.msra.mxu0 0.0
    %726 = vmatprep.subr.mxu0 0.0
    %727 = vmatpush1.msra.mxu0 0.0
    %728 = vmatprep.subr.mxu0 0.0
    %729 = vmatpush1.msra.mxu0 0.0
    %730 = vmatprep.subr.mxu0 0.0
    %731 = vmatpush1.msra.mxu0 0.0
    %732 = vmatprep.subr.mxu0 0.0
    %733 = vmatpush1.msra.mxu0 0.0
    %734 = vmatprep.subr.mxu0 0.0
    %735 = vmatpush1.msra.mxu0 0.0
    %736 = vmatprep.subr.mxu0 0.0
    %737 = vmatpush1.msra.mxu0 0.0
    %738 = vmatprep.subr.mxu0 0.0
    %739 = vmatpush1.msra.mxu0 0.0
    %740 = vmatprep.subr.mxu0 0.0
    %741 = vmatpush1.msra.mxu0 0.0
    %742 = vmatprep.mubr.f32.mxu0 0.0
    %743 = vmatmul.mubr.f32.gmra.mrb[0].mxu0 %v673
    %v744 = vpop.f32.mrb[0].mxu0
    %v745 = vadd.f32 0.0, %v744
    %v746 = vpop.f32.mrb[0].mxu0
    %747 = vmatprep.mubr.f32.mxu0 0.0
    %748 = vmatmul.mubr.f32.gmra.mrb[0].mxu0 %v676
    %v749 = vpop.f32.mrb[0].mxu0
    %v750 = vadd.f32 0.0, %v749
    %v751 = vpop.f32.mrb[0].mxu0
    %752 = vdwg.mxu0
    %v753 = vlaneseq
    %v754 = vshrl.u32 %v753, 7
    %v755 = vsub.s32 2, %v754
    %v756 = vrot.slane %v307, %v755
    %758 = vrot.lane.b32.xlu0 %v756, 64
    %v759 = vpop.permute.xlu0 %758
    %v761 = vmul.f32 %v292, %v759
    %v762 = vmul.f32 %v297, %v759
    %765 = vrot.lane.b32.xlu0 %v761, 64
    %v766 = vpop.permute.xlu0 %765
    %767 = vrot.lane.b32.xlu0 %v762, 64
    %v768 = vpop.permute.xlu0 %767
    %v771 = vsel %vm133, %v766, 0.0
    %772 = vadd.xlane.f32.xlu0 %v771
    %v773 = vpop.xlane.xlu0 %772
    %v774 = vsel %vm133, %v768, 0.0
    %775 = vadd.xlane.f32.xlu0 %v774
    %v776 = vpop.xlane.xlu0 %775
    %v777 = vrot.slane %v306, 2
    %778 = vrot.lane.b32.xlu0 %v292, 64
    %v779 = vpop.permute.xlu0 %778
    %780 = vrot.lane.b32.xlu0 %v297, 64
    %v781 = vpop.permute.xlu0 %780
    %v782 = vsel %vm133, %v777, 0
    %v784 = vsel %vm133, %v779, 0
    %v786 = vsel %vm133, %v781, 0
    %788 = vmatprep.subr.mxu0 0.0
    %789 = vmatpush1.xpose.msra.mxu0 %v784
    %790 = vmatprep.subr.mxu0 0.0
    %791 = vmatpush1.xpose.msra.mxu0 %v786
    %792 = vmatprep.subr.mxu0 0.0
    %793 = vmatpush1.xpose.msra.mxu0 0.0
    %794 = vmatprep.subr.mxu0 0.0
    %795 = vmatpush1.xpose.msra.mxu0 0.0
    %796 = vmatprep.subr.mxu0 0.0
    %797 = vmatpush1.xpose.msra.mxu0 0.0
    %798 = vmatprep.subr.mxu0 0.0
    %799 = vmatpush1.xpose.msra.mxu0 0.0
    %800 = vmatprep.subr.mxu0 0.0
    %801 = vmatpush1.xpose.msra.mxu0 0.0
    %802 = vmatprep.subr.mxu0 0.0
    %803 = vmatpush1.xpose.msra.mxu0 0.0
    %804 = vmatprep.subr.mxu0 0.0
    %805 = vmatpush1.xpose.msra.mxu0 0.0
    %806 = vmatprep.subr.mxu0 0.0
    %807 = vmatpush1.xpose.msra.mxu0 0.0
    %808 = vmatprep.subr.mxu0 0.0
    %809 = vmatpush1.xpose.msra.mxu0 0.0
    %810 = vmatprep.subr.mxu0 0.0
    %811 = vmatpush1.xpose.msra.mxu0 0.0
    %812 = vmatprep.subr.mxu0 0.0
    %813 = vmatpush1.xpose.msra.mxu0 0.0
    %814 = vmatprep.subr.mxu0 0.0
    %815 = vmatpush1.xpose.msra.mxu0 0.0
    %816 = vmatprep.subr.mxu0 0.0
    %817 = vmatpush1.xpose.msra.mxu0 0.0
    %818 = vmatprep.subr.mxu0 0.0
    %819 = vmatpush1.xpose.msra.mxu0 0.0
    %820 = vmatprep.subr.mxu0 0.0
    %821 = vmatpush1.xpose.msra.mxu0 0.0
    %822 = vmatprep.subr.mxu0 0.0
    %823 = vmatpush1.xpose.msra.mxu0 0.0
    %824 = vmatprep.subr.mxu0 0.0
    %825 = vmatpush1.xpose.msra.mxu0 0.0
    %826 = vmatprep.subr.mxu0 0.0
    %827 = vmatpush1.xpose.msra.mxu0 0.0
    %828 = vmatprep.subr.mxu0 0.0
    %829 = vmatpush1.xpose.msra.mxu0 0.0
    %830 = vmatprep.subr.mxu0 0.0
    %831 = vmatpush1.xpose.msra.mxu0 0.0
    %832 = vmatprep.subr.mxu0 0.0
    %833 = vmatpush1.xpose.msra.mxu0 0.0
    %834 = vmatprep.subr.mxu0 0.0
    %835 = vmatpush1.xpose.msra.mxu0 0.0
    %836 = vmatprep.subr.mxu0 0.0
    %837 = vmatpush1.xpose.msra.mxu0 0.0
    %838 = vmatprep.subr.mxu0 0.0
    %839 = vmatpush1.xpose.msra.mxu0 0.0
    %840 = vmatprep.subr.mxu0 0.0
    %841 = vmatpush1.xpose.msra.mxu0 0.0
    %842 = vmatprep.subr.mxu0 0.0
    %843 = vmatpush1.xpose.msra.mxu0 0.0
    %844 = vmatprep.subr.mxu0 0.0
    %845 = vmatpush1.xpose.msra.mxu0 0.0
    %846 = vmatprep.subr.mxu0 0.0
    %847 = vmatpush1.xpose.msra.mxu0 0.0
    %848 = vmatprep.subr.mxu0 0.0
    %849 = vmatpush1.xpose.msra.mxu0 0.0
    %850 = vmatprep.subr.mxu0 0.0
    %851 = vmatpush1.xpose.msra.mxu0 0.0
    %852 = vmatprep.mubr.f32.mxu0 0.0
    %853 = vmatmul.mubr.f32.gmra.mrb[0].mxu0 %v782
    %v854 = vpop.f32.mrb[0].mxu0
    %v855 = vadd.f32 0.0, %v854
    %v856 = vpop.f32.mrb[0].mxu0
    %857 = vdwg.mxu0
    %v858 = vlaneseq
    %v859 = vshrl.u32 %v858, 7
    %v860 = vsub.s32 0, %v859
    %v861 = vrot.slane %v855, %v860
    %v862 = vadd.f32 %v773, %v861
    %v863 = vadd.f32 %v776, %v861
    %vm864 = vcmp.gt.f32.partialorder %v862, 0.0
    %vm865 = vcmp.gt.f32.partialorder %v863, 0.0
    %v866 = vmul.f32 %v862, 0.2
    %v867 = vmul.f32 %v863, 0.2
    %v868 = vsel %vm864, %v862, %v866
    %v869 = vsel %vm865, %v863, %v867
    %v870 = vadd.f32 %v868, %v304
    %v871 = vadd.f32 %v869, %v305
    %v872 = vsel %vm413, %v870, -inf
    %873 = vmax.xlane.f32.xlu0 %v872
    %v874 = vpop.xlane.xlu0 %873
    %v875 = vsel %vm413, %v871, -inf
    %876 = vmax.xlane.f32.xlu0 %v875
    %v877 = vpop.xlane.xlu0 %876
    %v878 = vsub.f32 %v870, %v874
    %v879 = vsub.f32 %v871, %v877
    %v880 = vmul.f32 %v878, 1.442695
    %v881 = vpow.pop %v880
    %v882 = vmul.f32 %v879, 1.442695
    %v883 = vpow.pop %v882
    %v884 = vsel %vm302, %v881, 0.0
    %v885 = vsel %vm303, %v883, 0.0
    %v886 = vsel %vm413, %v884, 0.0
    %887 = vadd.xlane.f32.xlu0 %v886
    %v888 = vpop.xlane.xlu0 %887
    %v889 = vsel %vm413, %v885, 0.0
    %890 = vadd.xlane.f32.xlu0 %v889
    %v891 = vpop.xlane.xlu0 %890
    %vm892 = vcmp.gt.f32.partialorder %v888, 0.0
    %vm893 = vcmp.gt.f32.partialorder %v891, 0.0
    %v894 = vsel %vm892, %v888, 1.0
    %v895 = vsel %vm893, %v891, 1.0
    %v896 = vrcp.pop %v894
    %v897 = vrcp.pop %v895
    %v898 = vmul.f32 %v884, %v896
    %v899 = vmul.f32 %v885, %v897
    %v903 = vsel %vm413, %v898, 0
    %v906 = vsel %vm413, %v899, 0
    %908 = vmatprep.subr.mxu0 0.0
    %909 = vmatpush1.msra.mxu0 %v779
    %910 = vmatprep.subr.mxu0 0.0
    %911 = vmatpush1.msra.mxu0 %v781
    %912 = vmatprep.subr.mxu0 0.0
    %913 = vmatpush1.msra.mxu0 0.0
    %914 = vmatprep.subr.mxu0 0.0
    %915 = vmatpush1.msra.mxu0 0.0
    %916 = vmatprep.subr.mxu0 0.0
    %917 = vmatpush1.msra.mxu0 0.0
    %918 = vmatprep.subr.mxu0 0.0
    %919 = vmatpush1.msra.mxu0 0.0
    %920 = vmatprep.subr.mxu0 0.0
    %921 = vmatpush1.msra.mxu0 0.0
    %922 = vmatprep.subr.mxu0 0.0
    %923 = vmatpush1.msra.mxu0 0.0
    %924 = vmatprep.subr.mxu0 0.0
    %925 = vmatpush1.msra.mxu0 0.0
    %926 = vmatprep.subr.mxu0 0.0
    %927 = vmatpush1.msra.mxu0 0.0
    %928 = vmatprep.subr.mxu0 0.0
    %929 = vmatpush1.msra.mxu0 0.0
    %930 = vmatprep.subr.mxu0 0.0
    %931 = vmatpush1.msra.mxu0 0.0
    %932 = vmatprep.subr.mxu0 0.0
    %933 = vmatpush1.msra.mxu0 0.0
    %934 = vmatprep.subr.mxu0 0.0
    %935 = vmatpush1.msra.mxu0 0.0
    %936 = vmatprep.subr.mxu0 0.0
    %937 = vmatpush1.msra.mxu0 0.0
    %938 = vmatprep.subr.mxu0 0.0
    %939 = vmatpush1.msra.mxu0 0.0
    %940 = vmatprep.subr.mxu0 0.0
    %941 = vmatpush1.msra.mxu0 0.0
    %942 = vmatprep.subr.mxu0 0.0
    %943 = vmatpush1.msra.mxu0 0.0
    %944 = vmatprep.subr.mxu0 0.0
    %945 = vmatpush1.msra.mxu0 0.0
    %946 = vmatprep.subr.mxu0 0.0
    %947 = vmatpush1.msra.mxu0 0.0
    %948 = vmatprep.subr.mxu0 0.0
    %949 = vmatpush1.msra.mxu0 0.0
    %950 = vmatprep.subr.mxu0 0.0
    %951 = vmatpush1.msra.mxu0 0.0
    %952 = vmatprep.subr.mxu0 0.0
    %953 = vmatpush1.msra.mxu0 0.0
    %954 = vmatprep.subr.mxu0 0.0
    %955 = vmatpush1.msra.mxu0 0.0
    %956 = vmatprep.subr.mxu0 0.0
    %957 = vmatpush1.msra.mxu0 0.0
    %958 = vmatprep.subr.mxu0 0.0
    %959 = vmatpush1.msra.mxu0 0.0
    %960 = vmatprep.subr.mxu0 0.0
    %961 = vmatpush1.msra.mxu0 0.0
    %962 = vmatprep.subr.mxu0 0.0
    %963 = vmatpush1.msra.mxu0 0.0
    %964 = vmatprep.subr.mxu0 0.0
    %965 = vmatpush1.msra.mxu0 0.0
    %966 = vmatprep.subr.mxu0 0.0
    %967 = vmatpush1.msra.mxu0 0.0
    %968 = vmatprep.subr.mxu0 0.0
    %969 = vmatpush1.msra.mxu0 0.0
    %970 = vmatprep.subr.mxu0 0.0
    %971 = vmatpush1.msra.mxu0 0.0
    %972 = vmatprep.mubr.f32.mxu0 0.0
    %973 = vmatmul.mubr.f32.gmra.mrb[0].mxu0 %v903
    %v974 = vpop.f32.mrb[0].mxu0
    %v975 = vadd.f32 0.0, %v974
    %v976 = vpop.f32.mrb[0].mxu0
    %977 = vmatprep.mubr.f32.mxu0 0.0
    %978 = vmatmul.mubr.f32.gmra.mrb[0].mxu0 %v906
    %v979 = vpop.f32.mrb[0].mxu0
    %v980 = vadd.f32 0.0, %v979
    %v981 = vpop.f32.mrb[0].mxu0
    %982 = vdwg.mxu0
    %v983 = vlaneseq
    %v984 = vshrl.u32 %v983, 7
    %v985 = vsub.s32 3, %v984
    %v986 = vrot.slane %v307, %v985
    %988 = vrot.lane.b32.xlu0 %v986, 96
    %v989 = vpop.permute.xlu0 %988
    %v991 = vmul.f32 %v292, %v989
    %v992 = vmul.f32 %v297, %v989
    %995 = vrot.lane.b32.xlu0 %v991, 32
    %v996 = vpop.permute.xlu0 %995
    %997 = vrot.lane.b32.xlu0 %v992, 32
    %v998 = vpop.permute.xlu0 %997
    %v1001 = vsel %vm133, %v996, 0.0
    %1002 = vadd.xlane.f32.xlu0 %v1001
    %v1003 = vpop.xlane.xlu0 %1002
    %v1004 = vsel %vm133, %v998, 0.0
    %1005 = vadd.xlane.f32.xlu0 %v1004
    %v1006 = vpop.xlane.xlu0 %1005
    %v1007 = vrot.slane %v306, 3
    %1008 = vrot.lane.b32.xlu0 %v292, 32
    %v1009 = vpop.permute.xlu0 %1008
    %1010 = vrot.lane.b32.xlu0 %v297, 32
    %v1011 = vpop.permute.xlu0 %1010
    %v1012 = vsel %vm133, %v1007, 0
    %v1014 = vsel %vm133, %v1009, 0
    %v1016 = vsel %vm133, %v1011, 0
    %1018 = vmatprep.subr.mxu0 0.0
    %1019 = vmatpush1.xpose.msra.mxu0 %v1014
    %1020 = vmatprep.subr.mxu0 0.0
    %1021 = vmatpush1.xpose.msra.mxu0 %v1016
    %1022 = vmatprep.subr.mxu0 0.0
    %1023 = vmatpush1.xpose.msra.mxu0 0.0
    %1024 = vmatprep.subr.mxu0 0.0
    %1025 = vmatpush1.xpose.msra.mxu0 0.0
    %1026 = vmatprep.subr.mxu0 0.0
    %1027 = vmatpush1.xpose.msra.mxu0 0.0
    %1028 = vmatprep.subr.mxu0 0.0
    %1029 = vmatpush1.xpose.msra.mxu0 0.0
    %1030 = vmatprep.subr.mxu0 0.0
    %1031 = vmatpush1.xpose.msra.mxu0 0.0
    %1032 = vmatprep.subr.mxu0 0.0
    %1033 = vmatpush1.xpose.msra.mxu0 0.0
    %1034 = vmatprep.subr.mxu0 0.0
    %1035 = vmatpush1.xpose.msra.mxu0 0.0
    %1036 = vmatprep.subr.mxu0 0.0
    %1037 = vmatpush1.xpose.msra.mxu0 0.0
    %1038 = vmatprep.subr.mxu0 0.0
    %1039 = vmatpush1.xpose.msra.mxu0 0.0
    %1040 = vmatprep.subr.mxu0 0.0
    %1041 = vmatpush1.xpose.msra.mxu0 0.0
    %1042 = vmatprep.subr.mxu0 0.0
    %1043 = vmatpush1.xpose.msra.mxu0 0.0
    %1044 = vmatprep.subr.mxu0 0.0
    %1045 = vmatpush1.xpose.msra.mxu0 0.0
    %1046 = vmatprep.subr.mxu0 0.0
    %1047 = vmatpush1.xpose.msra.mxu0 0.0
    %1048 = vmatprep.subr.mxu0 0.0
    %1049 = vmatpush1.xpose.msra.mxu0 0.0
    %1050 = vmatprep.subr.mxu0 0.0
    %1051 = vmatpush1.xpose.msra.mxu0 0.0
    %1052 = vmatprep.subr.mxu0 0.0
    %1053 = vmatpush1.xpose.msra.mxu0 0.0
    %1054 = vmatprep.subr.mxu0 0.0
    %1055 = vmatpush1.xpose.msra.mxu0 0.0
    %1056 = vmatprep.subr.mxu0 0.0
    %1057 = vmatpush1.xpose.msra.mxu0 0.0
    %1058 = vmatprep.subr.mxu0 0.0
    %1059 = vmatpush1.xpose.msra.mxu0 0.0
    %1060 = vmatprep.subr.mxu0 0.0
    %1061 = vmatpush1.xpose.msra.mxu0 0.0
    %1062 = vmatprep.subr.mxu0 0.0
    %1063 = vmatpush1.xpose.msra.mxu0 0.0
    %1064 = vmatprep.subr.mxu0 0.0
    %1065 = vmatpush1.xpose.msra.mxu0 0.0
    %1066 = vmatprep.subr.mxu0 0.0
    %1067 = vmatpush1.xpose.msra.mxu0 0.0
    %1068 = vmatprep.subr.mxu0 0.0
    %1069 = vmatpush1.xpose.msra.mxu0 0.0
    %1070 = vmatprep.subr.mxu0 0.0
    %1071 = vmatpush1.xpose.msra.mxu0 0.0
    %1072 = vmatprep.subr.mxu0 0.0
    %1073 = vmatpush1.xpose.msra.mxu0 0.0
    %1074 = vmatprep.subr.mxu0 0.0
    %1075 = vmatpush1.xpose.msra.mxu0 0.0
    %1076 = vmatprep.subr.mxu0 0.0
    %1077 = vmatpush1.xpose.msra.mxu0 0.0
    %1078 = vmatprep.subr.mxu0 0.0
    %1079 = vmatpush1.xpose.msra.mxu0 0.0
    %1080 = vmatprep.subr.mxu0 0.0
    %1081 = vmatpush1.xpose.msra.mxu0 0.0
    %1082 = vmatprep.mubr.f32.mxu0 0.0
    %1083 = vmatmul.mubr.f32.gmra.mrb[0].mxu0 %v1012
    %v1084 = vpop.f32.mrb[0].mxu0
    %v1085 = vadd.f32 0.0, %v1084
    %v1086 = vpop.f32.mrb[0].mxu0
    %1087 = vdwg.mxu0
    %v1088 = vlaneseq
    %v1089 = vshrl.u32 %v1088, 7
    %v1090 = vsub.s32 0, %v1089
    %v1091 = vrot.slane %v1085, %v1090
    %v1092 = vadd.f32 %v1003, %v1091
    %v1093 = vadd.f32 %v1006, %v1091
    %vm1094 = vcmp.gt.f32.partialorder %v1092, 0.0
    %vm1095 = vcmp.gt.f32.partialorder %v1093, 0.0
    %v1096 = vmul.f32 %v1092, 0.2
    %v1097 = vmul.f32 %v1093, 0.2
    %v1098 = vsel %vm1094, %v1092, %v1096
    %v1099 = vsel %vm1095, %v1093, %v1097
    %v1100 = vadd.f32 %v1098, %v304
    %v1101 = vadd.f32 %v1099, %v305
    %v1102 = vsel %vm413, %v1100, -inf
    %1103 = vmax.xlane.f32.xlu0 %v1102
    %v1104 = vpop.xlane.xlu0 %1103
    %v1105 = vsel %vm413, %v1101, -inf
    %1106 = vmax.xlane.f32.xlu0 %v1105
    %v1107 = vpop.xlane.xlu0 %1106
    %v1108 = vsub.f32 %v1100, %v1104
    %v1109 = vsub.f32 %v1101, %v1107
    %v1110 = vmul.f32 %v1108, 1.442695
    %v1111 = vpow.pop %v1110
    %v1112 = vmul.f32 %v1109, 1.442695
    %v1113 = vpow.pop %v1112
    %v1114 = vsel %vm302, %v1111, 0.0
    %v1115 = vsel %vm303, %v1113, 0.0
    %v1116 = vsel %vm413, %v1114, 0.0
    %1117 = vadd.xlane.f32.xlu0 %v1116
    %v1118 = vpop.xlane.xlu0 %1117
    %v1119 = vsel %vm413, %v1115, 0.0
    %1120 = vadd.xlane.f32.xlu0 %v1119
    %v1121 = vpop.xlane.xlu0 %1120
    %vm1122 = vcmp.gt.f32.partialorder %v1118, 0.0
    %vm1123 = vcmp.gt.f32.partialorder %v1121, 0.0
    %v1124 = vsel %vm1122, %v1118, 1.0
    %v1125 = vsel %vm1123, %v1121, 1.0
    %v1126 = vrcp.pop %v1124
    %v1127 = vrcp.pop %v1125
    %v1128 = vmul.f32 %v1114, %v1126
    %v1129 = vmul.f32 %v1115, %v1127
    %v1133 = vsel %vm413, %v1128, 0
    %v1136 = vsel %vm413, %v1129, 0
    %1138 = vmatprep.subr.mxu0 0.0
    %1139 = vmatpush1.msra.mxu0 %v1009
    %1140 = vmatprep.subr.mxu0 0.0
    %1141 = vmatpush1.msra.mxu0 %v1011
    %1142 = vmatprep.subr.mxu0 0.0
    %1143 = vmatpush1.msra.mxu0 0.0
    %1144 = vmatprep.subr.mxu0 0.0
    %1145 = vmatpush1.msra.mxu0 0.0
    %1146 = vmatprep.subr.mxu0 0.0
    %1147 = vmatpush1.msra.mxu0 0.0
    %1148 = vmatprep.subr.mxu0 0.0
    %1149 = vmatpush1.msra.mxu0 0.0
    %1150 = vmatprep.subr.mxu0 0.0
    %1151 = vmatpush1.msra.mxu0 0.0
    %1152 = vmatprep.subr.mxu0 0.0
    %1153 = vmatpush1.msra.mxu0 0.0
    %1154 = vmatprep.subr.mxu0 0.0
    %1155 = vmatpush1.msra.mxu0 0.0
    %1156 = vmatprep.subr.mxu0 0.0
    %1157 = vmatpush1.msra.mxu0 0.0
    %1158 = vmatprep.subr.mxu0 0.0
    %1159 = vmatpush1.msra.mxu0 0.0
    %1160 = vmatprep.subr.mxu0 0.0
    %1161 = vmatpush1.msra.mxu0 0.0
    %1162 = vmatprep.subr.mxu0 0.0
    %1163 = vmatpush1.msra.mxu0 0.0
    %1164 = vmatprep.subr.mxu0 0.0
    %1165 = vmatpush1.msra.mxu0 0.0
    %1166 = vmatprep.subr.mxu0 0.0
    %1167 = vmatpush1.msra.mxu0 0.0
    %1168 = vmatprep.subr.mxu0 0.0
    %1169 = vmatpush1.msra.mxu0 0.0
    %1170 = vmatprep.subr.mxu0 0.0
    %1171 = vmatpush1.msra.mxu0 0.0
    %1172 = vmatprep.subr.mxu0 0.0
    %1173 = vmatpush1.msra.mxu0 0.0
    %1174 = vmatprep.subr.mxu0 0.0
    %1175 = vmatpush1.msra.mxu0 0.0
    %1176 = vmatprep.subr.mxu0 0.0
    %1177 = vmatpush1.msra.mxu0 0.0
    %1178 = vmatprep.subr.mxu0 0.0
    %1179 = vmatpush1.msra.mxu0 0.0
    %1180 = vmatprep.subr.mxu0 0.0
    %1181 = vmatpush1.msra.mxu0 0.0
    %1182 = vmatprep.subr.mxu0 0.0
    %1183 = vmatpush1.msra.mxu0 0.0
    %1184 = vmatprep.subr.mxu0 0.0
    %1185 = vmatpush1.msra.mxu0 0.0
    %1186 = vmatprep.subr.mxu0 0.0
    %1187 = vmatpush1.msra.mxu0 0.0
    %1188 = vmatprep.subr.mxu0 0.0
    %1189 = vmatpush1.msra.mxu0 0.0
    %1190 = vmatprep.subr.mxu0 0.0
    %1191 = vmatpush1.msra.mxu0 0.0
    %1192 = vmatprep.subr.mxu0 0.0
    %1193 = vmatpush1.msra.mxu0 0.0
    %1194 = vmatprep.subr.mxu0 0.0
    %1195 = vmatpush1.msra.mxu0 0.0
    %1196 = vmatprep.subr.mxu0 0.0
    %1197 = vmatpush1.msra.mxu0 0.0
    %1198 = vmatprep.subr.mxu0 0.0
    %1199 = vmatpush1.msra.mxu0 0.0
    %1200 = vmatprep.subr.mxu0 0.0
    %1201 = vmatpush1.msra.mxu0 0.0
    %1202 = vmatprep.mubr.f32.mxu0 0.0
    %1203 = vmatmul.mubr.f32.gmra.mrb[0].mxu0 %v1133
    %v1204 = vpop.f32.mrb[0].mxu0
    %v1205 = vadd.f32 0.0, %v1204
    %v1206 = vpop.f32.mrb[0].mxu0
    %1207 = vmatprep.mubr.f32.mxu0 0.0
    %1208 = vmatmul.mubr.f32.gmra.mrb[0].mxu0 %v1136
    %v1209 = vpop.f32.mrb[0].mxu0
    %v1210 = vadd.f32 0.0, %v1209
    %v1211 = vpop.f32.mrb[0].mxu0
    %1212 = vdwg.mxu0
    %1215 = vrot.lane.b32.xlu0 %v745, 32
    %v1216 = vpop.permute.xlu0 %1215
    %1217 = vrot.lane.b32.xlu0 %v750, 32
    %v1218 = vpop.permute.xlu0 %1217
    %1223 = vrot.lane.b32.xlu0 %v975, 64
    %v1224 = vpop.permute.xlu0 %1223
    %1225 = vrot.lane.b32.xlu0 %v980, 64
    %v1226 = vpop.permute.xlu0 %1225
    %1231 = vrot.lane.b32.xlu0 %v1205, 96
    %v1232 = vpop.permute.xlu0 %1231
    %1233 = vrot.lane.b32.xlu0 %v1210, 96
    %v1234 = vpop.permute.xlu0 %1233
    %v1237 = vsel %vm133, %v515, %v1216
    %v1238 = vsel %vm133, %v520, %v1218
    %vm1239 = vcmask 523264
    %v1240 = vsel %vm1239, %v1237, %v1224
    %v1241 = vsel %vm1239, %v1238, %v1226
    %vm1242 = vcmask 785408
    %v1243 = vsel %vm1242, %v1240, %v1232
    %v1244 = vsel %vm1242, %v1241, %v1234
    %v1245 = vld [vmem:[%s7] sm:$0xff]
    %v1246 = vld [vmem:[%s7 + $0x8] sm:$0xff]
    %v1247 = vld [vmem:[%s7 + $0x10] sm:$0xff]
    %v1248 = vld [vmem:[%s7 + $0x18] sm:$0xff]
    %v1249 = vld [vmem:[%s7 + $0x20] sm:$0xff]
    %v1250 = vld [vmem:[%s7 + $0x28] sm:$0xff]
    %v1251 = vld [vmem:[%s7 + $0x30] sm:$0xff]
    %v1252 = vld [vmem:[%s7 + $0x38] sm:$0xff]
    %v1253 = vld [vmem:[%s7 + $0x40] sm:$0xff]
    %v1254 = vld [vmem:[%s7 + $0x48] sm:$0xff]
    %v1255 = vld [vmem:[%s7 + $0x50] sm:$0xff]
    %v1256 = vld [vmem:[%s7 + $0x58] sm:$0xff]
    %v1257 = vld [vmem:[%s7 + $0x60] sm:$0xff]
    %v1258 = vld [vmem:[%s7 + $0x68] sm:$0xff]
    %v1259 = vld [vmem:[%s7 + $0x70] sm:$0xff]
    %v1260 = vld [vmem:[%s7 + $0x78] sm:$0xff]
    %v1261 = vld [vmem:[%s8] sm:$0x1]
    %v1263 = vlaneseq
    %v1264 = vshrl.u32 %v1263, 7
    %v1265 = vsub.s32 0, %v1264
    %v1266 = vrot.slane %v1261, %v1265
    %1268 = vmatprep.subr.mxu0 0.0
    %1269 = vmatpush1.msra.mxu0 %v1245
    %1270 = vmatprep.subr.mxu0 0.0
    %1271 = vmatpush1.msra.mxu0 %v1246
    %1272 = vmatprep.subr.mxu0 0.0
    %1273 = vmatpush1.msra.mxu0 %v1247
    %1274 = vmatprep.subr.mxu0 0.0
    %1275 = vmatpush1.msra.mxu0 %v1248
    %1276 = vmatprep.subr.mxu0 0.0
    %1277 = vmatpush1.msra.mxu0 %v1249
    %1278 = vmatprep.subr.mxu0 0.0
    %1279 = vmatpush1.msra.mxu0 %v1250
    %1280 = vmatprep.subr.mxu0 0.0
    %1281 = vmatpush1.msra.mxu0 %v1251
    %1282 = vmatprep.subr.mxu0 0.0
    %1283 = vmatpush1.msra.mxu0 %v1252
    %1284 = vmatprep.subr.mxu0 0.0
    %1285 = vmatpush1.msra.mxu0 %v1253
    %1286 = vmatprep.subr.mxu0 0.0
    %1287 = vmatpush1.msra.mxu0 %v1254
    %1288 = vmatprep.subr.mxu0 0.0
    %1289 = vmatpush1.msra.mxu0 %v1255
    %1290 = vmatprep.subr.mxu0 0.0
    %1291 = vmatpush1.msra.mxu0 %v1256
    %1292 = vmatprep.subr.mxu0 0.0
    %1293 = vmatpush1.msra.mxu0 %v1257
    %1294 = vmatprep.subr.mxu0 0.0
    %1295 = vmatpush1.msra.mxu0 %v1258
    %1296 = vmatprep.subr.mxu0 0.0
    %1297 = vmatpush1.msra.mxu0 %v1259
    %1298 = vmatprep.subr.mxu0 0.0
    %1299 = vmatpush1.msra.mxu0 %v1260
    %1300 = vmatprep.subr.mxu0 0.0
    %1301 = vmatpush1.msra.mxu0 0.0
    %1302 = vmatprep.subr.mxu0 0.0
    %1303 = vmatpush1.msra.mxu0 0.0
    %1304 = vmatprep.subr.mxu0 0.0
    %1305 = vmatpush1.msra.mxu0 0.0
    %1306 = vmatprep.subr.mxu0 0.0
    %1307 = vmatpush1.msra.mxu0 0.0
    %1308 = vmatprep.subr.mxu0 0.0
    %1309 = vmatpush1.msra.mxu0 0.0
    %1310 = vmatprep.subr.mxu0 0.0
    %1311 = vmatpush1.msra.mxu0 0.0
    %1312 = vmatprep.subr.mxu0 0.0
    %1313 = vmatpush1.msra.mxu0 0.0
    %1314 = vmatprep.subr.mxu0 0.0
    %1315 = vmatpush1.msra.mxu0 0.0
    %1316 = vmatprep.subr.mxu0 0.0
    %1317 = vmatpush1.msra.mxu0 0.0
    %1318 = vmatprep.subr.mxu0 0.0
    %1319 = vmatpush1.msra.mxu0 0.0
    %1320 = vmatprep.subr.mxu0 0.0
    %1321 = vmatpush1.msra.mxu0 0.0
    %1322 = vmatprep.subr.mxu0 0.0
    %1323 = vmatpush1.msra.mxu0 0.0
    %1324 = vmatprep.subr.mxu0 0.0
    %1325 = vmatpush1.msra.mxu0 0.0
    %1326 = vmatprep.subr.mxu0 0.0
    %1327 = vmatpush1.msra.mxu0 0.0
    %1328 = vmatprep.subr.mxu0 0.0
    %1329 = vmatpush1.msra.mxu0 0.0
    %1330 = vmatprep.subr.mxu0 0.0
    %1331 = vmatpush1.msra.mxu0 0.0
    %1332 = vmatprep.mubr.f32.mxu0 0.0
    %1333 = vmatmul.mubr.f32.gmra.mrb[0].mxu0 %v1243
    %v1334 = vpop.f32.mrb[0].mxu0
    %v1335 = vadd.f32 %v1266, %v1334
    %v1336 = vpop.f32.mrb[0].mxu0
    %1337 = vmatprep.mubr.f32.mxu0 0.0
    %1338 = vmatmul.mubr.f32.gmra.mrb[0].mxu0 %v1244
    %v1339 = vpop.f32.mrb[0].mxu0
    %v1340 = vadd.f32 %v1266, %v1339
    %v1341 = vpop.f32.mrb[0].mxu0
    %1342 = vdwg.mxu0
    %v1343 = vmul.f32 %v1335, %v1335
    %v1344 = vmul.f32 %v1340, %v1340
    %v1345 = vsel %vm133, %v1343, 0.0
    %1346 = vadd.xlane.f32.xlu0 %v1345
    %v1347 = vpop.xlane.xlu0 %1346
    %v1348 = vsel %vm133, %v1344, 0.0
    %1349 = vadd.xlane.f32.xlu0 %v1348
    %v1350 = vpop.xlane.xlu0 %1349
    %v1351 = vadd.f32 %v1347, 1e-08
    %v1352 = vadd.f32 %v1350, 1e-08
    %v1353 = vrsqrt.pop %v1351
    %v1354 = vrsqrt.pop %v1352
    %v1355 = vmul.f32 %v1335, %v1353
    %v1356 = vmul.f32 %v1340, %v1354
    %v1358 = vrot.slane %v1355, 2
    %v1360 = vsub.f32 %v1355, %v1358
    %v1361 = vmul.f32 %v1360, %v1360
    %v1362 = vsel %vm151, %v1361, 0.0
    %1363 = vadd.xlane.f32.xlu0 %v1362
    %v1364 = vpop.xlane.xlu0 %1363
    %v1365 = vadd.f32 %v1364, 1e-09
    %v1366 = vrsqrt.pop %v1365
    %v1367 = vmul.f32 %v1365, %v1366
    %vm1368 = vcmp.eq.f32.partialorder %v1365, inf
    %v1369 = vsel %vm1368, %v1365, %v1367
    %vm1370 = vcmp.eq.f32.partialorder %v1365, 0.0
    %v1371 = vand.u32 %v1365, 2147483648
    %v1372 = vsel %vm1370, %v1371, %v1369
    %v1373 = vsel %vm163, %v1361, 0.0
    %1374 = vadd.xlane.f32.xlu0 %v1373
    %v1375 = vpop.xlane.xlu0 %1374
    %v1376 = vadd.f32 %v1375, 1e-09
    %v1377 = vrsqrt.pop %v1376
    %v1378 = vmul.f32 %v1376, %v1377
    %vm1379 = vcmp.eq.f32.partialorder %v1376, inf
    %v1380 = vsel %vm1379, %v1376, %v1378
    %vm1381 = vcmp.eq.f32.partialorder %v1376, 0.0
    %v1382 = vand.u32 %v1376, 2147483648
    %v1383 = vsel %vm1381, %v1382, %v1380
    %v1385 = vrot.slane %v1383, 1
    %v1387 = vmul.f32 %v1372, %v1385
    %v1388 = vrot.slane %v1355, 3
    %v1390 = vsub.f32 %v1355, %v1388
    %v1391 = vmul.f32 %v1390, %v1390
    %v1392 = vsel %vm151, %v1391, 0.0
    %1393 = vadd.xlane.f32.xlu0 %v1392
    %v1394 = vpop.xlane.xlu0 %1393
    %v1395 = vadd.f32 %v1394, 1e-09
    %v1396 = vrsqrt.pop %v1395
    %v1397 = vmul.f32 %v1395, %v1396
    %vm1398 = vcmp.eq.f32.partialorder %v1395, inf
    %v1399 = vsel %vm1398, %v1395, %v1397
    %vm1400 = vcmp.eq.f32.partialorder %v1395, 0.0
    %v1401 = vand.u32 %v1395, 2147483648
    %v1402 = vsel %vm1400, %v1401, %v1399
    %v1403 = vrot.slane %v1355, 1
    %v1405 = vsub.f32 %v1355, %v1403
    %v1406 = vmul.f32 %v1405, %v1405
    %v1407 = vsel %vm163, %v1406, 0.0
    %1408 = vadd.xlane.f32.xlu0 %v1407
    %v1409 = vpop.xlane.xlu0 %1408
    %v1410 = vadd.f32 %v1409, 1e-09
    %v1411 = vrsqrt.pop %v1410
    %v1412 = vmul.f32 %v1410, %v1411
    %vm1413 = vcmp.eq.f32.partialorder %v1410, inf
    %v1414 = vsel %vm1413, %v1410, %v1412
    %vm1415 = vcmp.eq.f32.partialorder %v1410, 0.0
    %v1416 = vand.u32 %v1410, 2147483648
    %v1417 = vsel %vm1415, %v1416, %v1414
    %v1419 = vrot.slane %v1417, 1
    %v1421 = vmul.f32 %v1402, %v1419
    %v1422 = vadd.f32 %v1421, 1e-09
    %v1423 = vrcp.pop %v1422
    %v1424 = vmul.f32 %v1387, %v1423
    %v1425 = vadd.f32 %v1424, 1e-09
    %v1426 = vrcp.pop %v1425
    %v1427 = vmul.f32 %v215, %v1426
    %s1429 = vtos %v1427
    %v1430 = vstv %s1429
    %v1432 = vmul.f32 %v1355, %v1430
    %v1433 = vmul.f32 %v1356, %v1430
    %v1434 = vld [vmem:[%s9] sm:$0xff]
    %v1435 = vld [vmem:[%s9 + $0x8] sm:$0xff]
    %v1436 = vld [vmem:[%s9 + $0x10] sm:$0xff]
    %v1437 = vld [vmem:[%s9 + $0x18] sm:$0xff]
    %v1438 = vld [vmem:[%s10] sm:$0x1]
    %v1440 = vlaneseq
    %v1441 = vshrl.u32 %v1440, 7
    %v1442 = vsub.s32 0, %v1441
    %v1443 = vrot.slane %v1438, %v1442
    %v1446 = vsel %vm133, %v1432, 0
    %v1449 = vsel %vm133, %v1433, 0
    %1451 = vmatprep.subr.mxu0 0.0
    %1452 = vmatpush1.msra.mxu0 %v1434
    %1453 = vmatprep.subr.mxu0 0.0
    %1454 = vmatpush1.msra.mxu0 %v1435
    %1455 = vmatprep.subr.mxu0 0.0
    %1456 = vmatpush1.msra.mxu0 %v1436
    %1457 = vmatprep.subr.mxu0 0.0
    %1458 = vmatpush1.msra.mxu0 %v1437
    %1459 = vmatprep.subr.mxu0 0.0
    %1460 = vmatpush1.msra.mxu0 0.0
    %1461 = vmatprep.subr.mxu0 0.0
    %1462 = vmatpush1.msra.mxu0 0.0
    %1463 = vmatprep.subr.mxu0 0.0
    %1464 = vmatpush1.msra.mxu0 0.0
    %1465 = vmatprep.subr.mxu0 0.0
    %1466 = vmatpush1.msra.mxu0 0.0
    %1467 = vmatprep.subr.mxu0 0.0
    %1468 = vmatpush1.msra.mxu0 0.0
    %1469 = vmatprep.subr.mxu0 0.0
    %1470 = vmatpush1.msra.mxu0 0.0
    %1471 = vmatprep.subr.mxu0 0.0
    %1472 = vmatpush1.msra.mxu0 0.0
    %1473 = vmatprep.subr.mxu0 0.0
    %1474 = vmatpush1.msra.mxu0 0.0
    %1475 = vmatprep.subr.mxu0 0.0
    %1476 = vmatpush1.msra.mxu0 0.0
    %1477 = vmatprep.subr.mxu0 0.0
    %1478 = vmatpush1.msra.mxu0 0.0
    %1479 = vmatprep.subr.mxu0 0.0
    %1480 = vmatpush1.msra.mxu0 0.0
    %1481 = vmatprep.subr.mxu0 0.0
    %1482 = vmatpush1.msra.mxu0 0.0
    %1483 = vmatprep.subr.mxu0 0.0
    %1484 = vmatpush1.msra.mxu0 0.0
    %1485 = vmatprep.subr.mxu0 0.0
    %1486 = vmatpush1.msra.mxu0 0.0
    %1487 = vmatprep.subr.mxu0 0.0
    %1488 = vmatpush1.msra.mxu0 0.0
    %1489 = vmatprep.subr.mxu0 0.0
    %1490 = vmatpush1.msra.mxu0 0.0
    %1491 = vmatprep.subr.mxu0 0.0
    %1492 = vmatpush1.msra.mxu0 0.0
    %1493 = vmatprep.subr.mxu0 0.0
    %1494 = vmatpush1.msra.mxu0 0.0
    %1495 = vmatprep.subr.mxu0 0.0
    %1496 = vmatpush1.msra.mxu0 0.0
    %1497 = vmatprep.subr.mxu0 0.0
    %1498 = vmatpush1.msra.mxu0 0.0
    %1499 = vmatprep.subr.mxu0 0.0
    %1500 = vmatpush1.msra.mxu0 0.0
    %1501 = vmatprep.subr.mxu0 0.0
    %1502 = vmatpush1.msra.mxu0 0.0
    %1503 = vmatprep.subr.mxu0 0.0
    %1504 = vmatpush1.msra.mxu0 0.0
    %1505 = vmatprep.subr.mxu0 0.0
    %1506 = vmatpush1.msra.mxu0 0.0
    %1507 = vmatprep.subr.mxu0 0.0
    %1508 = vmatpush1.msra.mxu0 0.0
    %1509 = vmatprep.subr.mxu0 0.0
    %1510 = vmatpush1.msra.mxu0 0.0
    %1511 = vmatprep.subr.mxu0 0.0
    %1512 = vmatpush1.msra.mxu0 0.0
    %1513 = vmatprep.subr.mxu0 0.0
    %1514 = vmatpush1.msra.mxu0 0.0
    %1515 = vmatprep.mubr.f32.mxu0 0.0
    %1516 = vmatmul.mubr.f32.gmra.mrb[0].mxu0 %v1446
    %v1517 = vpop.f32.mrb[0].mxu0
    %v1518 = vadd.f32 %v1443, %v1517
    %v1519 = vpop.f32.mrb[0].mxu0
    %1520 = vmatprep.mubr.f32.mxu0 0.0
    %1521 = vmatmul.mubr.f32.gmra.mrb[0].mxu0 %v1449
    %v1522 = vpop.f32.mrb[0].mxu0
    %v1523 = vadd.f32 %v1443, %v1522
    %v1524 = vpop.f32.mrb[0].mxu0
    %1525 = vdwg.mxu0
    %v1526 = vmul.f32 %v1518, %v1518
    %v1527 = vmul.f32 %v1523, %v1523
    %v1528 = vsel %vm133, %v1526, 0.0
    %1529 = vadd.xlane.f32.xlu0 %v1528
    %v1530 = vpop.xlane.xlu0 %1529
    %v1531 = vsel %vm133, %v1527, 0.0
    %1532 = vadd.xlane.f32.xlu0 %v1531
    %v1533 = vpop.xlane.xlu0 %1532
    %v1534 = vadd.f32 %v1530, 1e-08
    %v1535 = vadd.f32 %v1533, 1e-08
    %v1536 = vrsqrt.pop %v1534
    %v1537 = vrsqrt.pop %v1535
    %v1538 = vmul.f32 %v1518, %v1536
    %v1539 = vmul.f32 %v1523, %v1537
    %v1540 = vmax.f32 %v1538, 0.0
    %v1541 = vmax.f32 %v1539, 0.0
    %1542 = vst.msk [vmem:[#allocation2] sm:$0xff] %vm133, %v1540
    %1543 = vst.msk [vmem:[#allocation2 + $0x8] sm:$0xff] %vm133, %v1541
    // Predicated region
    $region46: #{hgat_forward.1} parent=1 // pred_check
      _
    $region47: #{hgat_forward.1} parent=1 // pred_check_branch
      %1545 = sbr.rel (0) target = $region49
    $region48: #{hgat_forward.1} parent=1 // pred_region
      %s1547 = ssub.s32 256, 256
      %1548 = vsyncadd [#allocation3], %s1547
      %s1549 = sshll.u32 [#allocation2], 4
      %s1550 = int_to_ptr.vmem [resolvable:$true] %s1549
      %1555 = dma.vmem_to_hbm [thread:$0]  %s1550, 256, %s11, [#allocation3], 128, 128, 8
    $region49: #{hgat_forward.1} parent=1 // pred_fallthru
      _
    // Predicated region
    $region50: #{hgat_forward.1} parent=1 // pred_check
      _
    $region51: #{hgat_forward.1} parent=1 // pred_check_branch
      %1557 = sbr.rel (0) target = $region53
    $region52: #{hgat_forward.1} parent=1 // pred_region
      %1558 = dma.done [#allocation3], 256
    $region53: #{hgat_forward.1} parent=1 // pred_fallthru
      _
    %1559 = vsyncpa [#allocation3], 1

</llo_original>
